<compile_context>
chip_gen: v5e
topology: v5e:2x2
jax: 0.10.0
libtpu: 0.0.40
codegen_flags: <defaults>
</compile_context>

<pallas_src>
import functools

import jax
import jax.numpy as jnp
import numpy as np
from jax import lax
from jax.experimental import pallas as pl
from jax.experimental.pallas import tpu as pltpu

IN_CH = 16
HID = 32
OUT_CH = 8
NUM_LAYERS = 3
N_NODES = 16
HEAD_PAD = 128    # lane-dense fused head width
LN_EPS = 1e-5     # torch.nn.LayerNorm default
GEN_EPS = 1e-7    # GENConv message eps


def _make_kernel(num_layers, hid):
    H = hid

    def kernel(x_ref, idx_ref, enc_ref, cw_ref, vec_ref, head_ref, ct_ref,
               heads_ref, gmax_ref):
        f32 = jnp.float32
        bf16 = jnp.bfloat16
        n = x_ref.shape[0]
        e = idx_ref.shape[0]

        # Build bf16 one-hot gather/scatter matrices from int32 edge indices.
        idx = idx_ref[...]                                        # [E, 2] int32 (src, dst)
        node_ids = lax.broadcasted_iota(jnp.int32, (e, n), 1)     # [E, N]
        S = (idx[:, 0:1] == node_ids).astype(bf16)                # gather  (src one-hot)
        D = (idx[:, 1:2] == node_ids).astype(bf16)                # scatter (dst one-hot)
        # contract D's edge axis with a per-edge value, i.e. D^T @ v, transpose-free.
        scatter_dn = (((0,), (0,)), ((), ()))

        vs = vec_ref[...]                                         # [6L, 2H] packed vectors

        def layer_norm(h, g, b):
            # independent reductions (E[h], E[h^2]) so the two XLU passes can overlap.
            mu = jnp.mean(h, axis=-1, keepdims=True)
            ms = jnp.mean(h * h, axis=-1, keepdims=True)
            var = ms - mu * mu
            return (h - mu) * lax.rsqrt(var + LN_EPS) * g + b

        def gen_conv(h, l):
            r = 6 * l
            cb1 = vs[r + 0:r + 1, :]          # [1, 2H]
            clng = vs[r + 1:r + 2, :]         # [1, 2H]
            clnb = vs[r + 2:r + 3, :]         # [1, 2H]
            cb2 = vs[r + 3:r + 4, :H]         # [1, H]
            cw = cw_ref[l]                    # [3H, 2H]
            w1 = cw[:H, :]                    # [H, 2H]
            w2 = cw[H:, :H]                   # [2H, H]

            # message: x_j = x[src]; msg = relu(x_j) + eps   (bf16 MXU gather)
            xj = jnp.dot(S, h.astype(bf16), preferred_element_type=f32)     # [E, H]
            msg = jnp.maximum(xj, 0.0) + GEN_EPS
            sm = msg * ct_ref[l]                                            # learnable temperature
            # softmax aggregation over edges sharing a destination.
            # NOTE: stability shift uses the *global* per-channel max; it cancels
            # in numerator/denominator, and this bounded ReLU+eps config cannot
            # underflow a whole destination group.
            m = jnp.max(sm, axis=0, keepdims=True)                          # [1, H]
            w = jnp.exp(sm - m)                                             # [E, H]
            # fused scatter: one [E,2H] contraction yields denom and numerator.
            both = jnp.concatenate([w, w * msg], axis=-1).astype(bf16)      # [E, 2H]
            scat = lax.dot_general(D, both, scatter_dn,
                                   preferred_element_type=f32)              # [N, 2H]
            denom = jnp.maximum(scat[:, :H], 1e-20)
            aggr = scat[:, H:] / denom                                      # exact, [N, H]
            out = aggr + h                                                  # + x_r (root)
            # GENConv MLP: Linear -> LayerNorm -> ReLU -> (Dropout p=0) -> Linear
            h1 = jnp.dot(out, w1, preferred_element_type=f32) + cb1
            h1 = jnp.maximum(layer_norm(h1, clng, clnb), 0.0)
            return jnp.dot(h1, w2, preferred_element_type=f32) + cb2

        # node encoder
        enc = enc_ref[...]                                                  # [IN+1, H]
        x = jnp.dot(x_ref[...], enc[:-1, :], preferred_element_type=f32) + enc[-1:, :]
        # first DeepGCN layer: conv only (as in DeeperGCN.forward)
        x = gen_conv(x, 0)
        # remaining layers: 'res+' blocks (dropout is identity in inference)
        for l in range(1, num_layers):
            r = 6 * l
            z = jnp.maximum(layer_norm(x, vs[r + 4:r + 5, :H], vs[r + 5:r + 6, :H]), 0.0)
            x = x + gen_conv(z, l)
        # final act(norm(x)) uses layer 0's norm/act; final dropout is identity.
        x = jnp.maximum(layer_norm(x, vs[4:5, :H], vs[5:6, :H]), 0.0)
        # fused heads: one lane-dense [H+1,128] slab (weights + bias row).
        hs = head_ref[...]
        heads = jnp.dot(x, hs[:-1, :], preferred_element_type=f32) + hs[-1:, :]
        heads_ref[...] = heads
        gmax_ref[...] = jnp.max(heads, axis=0, keepdims=True)               # graph head: max over nodes

    return kernel


@functools.partial(jax.jit, static_argnames=("num_layers",))
def deeper_gcn_forward(x, edge_index, params, *, num_layers=NUM_LAYERS):
    n, in_ch = x.shape
    hid = params["enc_w"].shape[1]
    out_ch = params["g_w"].shape[1]
    e = edge_index.shape[1]

    # edge indices as one tiny [E, 2] int32 array; one-hots are built in-kernel.
    edge_idx = edge_index.astype(jnp.int32).T                               # [E, 2] (src, dst)

    # ---- pack tiny parameters into a few contiguous f32 slabs (fewer input DMAs) ----
    enc_slab = jnp.concatenate([params["enc_w"], params["enc_b"]], axis=0)  # [IN+1, H]

    w2_pad = jnp.pad(params["conv_w2"], ((0, 0), (0, 0), (0, hid)))         # [L, 2H, 2H]
    cw_slab = jnp.concatenate([params["conv_w1"], w2_pad], axis=1)          # [L, 3H, 2H]

    def pad_w(v):
        return jnp.pad(v, ((0, 0), (0, 2 * hid - v.shape[-1])))
    rows = []
    for l in range(num_layers):
        rows += [params["conv_b1"][l], params["conv_lng"][l], params["conv_lnb"][l],
                 pad_w(params["conv_b2"][l]), pad_w(params["layer_lng"][l]),
                 pad_w(params["layer_lnb"][l])]
    vec_slab = jnp.concatenate(rows, axis=0)                                # [6L, 2H]

    pad_lanes = HEAD_PAD - (2 * out_ch + 1)
    head_w = jnp.concatenate(
        [params["g_w"], params["n_w"], jnp.zeros((hid, pad_lanes), jnp.float32)], axis=1)
    head_b = jnp.concatenate(
        [params["g_b"], params["n_b"], jnp.zeros((1, pad_lanes), jnp.float32)], axis=1)
    head_slab = jnp.concatenate([head_w, head_b], axis=0)                   # [H+1, 128]

    # advisory cost estimate for the XLA scheduler (4 MXU matmuls / layer).
    mm_flops = 2 * n * in_ch * hid                                          # encoder
    mm_flops += num_layers * (2 * e * n * hid + 2 * e * n * 2 * hid)        # gather + fused scatter
    mm_flops += num_layers * (2 * n * hid * 2 * hid + 2 * n * 2 * hid * hid)  # conv MLP
    mm_flops += 2 * n * hid * HEAD_PAD                                      # fused heads
    bytes_accessed = 4 * (x.size + edge_idx.size + enc_slab.size + cw_slab.size
                          + vec_slab.size + head_slab.size + num_layers
                          + n * HEAD_PAD + HEAD_PAD)
    cost = pl.CostEstimate(flops=mm_flops,
                           transcendentals=num_layers * e * hid,
                           bytes_accessed=bytes_accessed)

    vmem = pl.BlockSpec(memory_space=pltpu.MemorySpace.VMEM)
    smem = pl.BlockSpec(memory_space=pltpu.MemorySpace.SMEM)
    in_specs = [vmem] * 6 + [smem]                                          # conv_t scalars in SMEM

    heads_slab, gmax = pl.pallas_call(
        _make_kernel(num_layers, hid),
        out_shape=(
            jax.ShapeDtypeStruct((n, HEAD_PAD), jnp.float32),
            jax.ShapeDtypeStruct((1, HEAD_PAD), jnp.float32),
        ),
        in_specs=in_specs,
        out_specs=(vmem, vmem),
        cost_estimate=cost,
    )(x, edge_idx, enc_slab, cw_slab, vec_slab, head_slab, params["conv_t"])

    g_out = gmax[0, :out_ch]
    n_out = heads_slab[:, out_ch:2 * out_ch + 1]
    return g_out, n_out


def init_params(key, in_ch, hid, out_ch, num_layers):
    k = jax.random.split(key, 8)

    def lin(kk, fi, fo):
        kw, kb = jax.random.split(kk)
        lim = 1.0 / float(np.sqrt(fi))
        w = jax.random.uniform(kw, (fi, fo), jnp.float32, -lim, lim)
        b = jax.random.uniform(kb, (1, fo), jnp.float32, -lim, lim)
        return w, b

    enc_w, enc_b = lin(k[0], in_ch, hid)
    w1s, b1s, w2s, b2s = [], [], [], []
    for l in range(num_layers):
        w1, b1 = lin(jax.random.fold_in(k[1], l), hid, 2 * hid)
        w2, b2 = lin(jax.random.fold_in(k[2], l), 2 * hid, hid)
        w1s.append(w1); b1s.append(b1); w2s.append(w2); b2s.append(b2)
    g_w, g_b = lin(k[3], hid, out_ch)
    n_w, n_b = lin(k[4], hid, out_ch + 1)
    return {
        "enc_w": enc_w, "enc_b": enc_b,
        "conv_w1": jnp.stack(w1s), "conv_b1": jnp.stack(b1s),
        "conv_lng": 1.0 + 0.05 * jax.random.normal(k[5], (num_layers, 1, 2 * hid), jnp.float32),
        "conv_lnb": 0.05 * jax.random.normal(k[6], (num_layers, 1, 2 * hid), jnp.float32),
        "conv_w2": jnp.stack(w2s), "conv_b2": jnp.stack(b2s),
        "conv_t": jnp.ones((num_layers,), jnp.float32),        # learn_t init t=1.0
        "layer_lng": 1.0 + 0.05 * jax.random.normal(k[7], (num_layers, 1, hid), jnp.float32),
        "layer_lnb": jnp.zeros((num_layers, 1, hid), jnp.float32),
        "g_w": g_w, "g_b": g_b, "n_w": n_w, "n_b": n_b,
    }


def ref_forward(x, edge_index, params, num_layers):
    """Pure-JAX reference (true scatter_softmax semantics) used only to verify the kernel."""
    n = x.shape[0]
    src, dst = edge_index[0], edge_index[1]

    def layer_norm(h, g, b):
        mu = h.mean(-1, keepdims=True)
        var = ((h - mu) ** 2).mean(-1, keepdims=True)
        return (h - mu) / jnp.sqrt(var + LN_EPS) * g + b

    def gen_conv(h, l):
        msg = jnp.maximum(h[src], 0.0) + GEN_EPS
        sm = msg * params["conv_t"][l]
        m = jax.ops.segment_max(sm, dst, num_segments=n)
        m = jnp.where(jnp.isfinite(m), m, 0.0)
        w = jnp.exp(sm - m[dst])
        denom = jax.ops.segment_sum(w, dst, num_segments=n)
        alpha = w / denom[dst]
        aggr = jax.ops.segment_sum(alpha * msg, dst, num_segments=n)
        out = aggr + h
        h1 = out @ params["conv_w1"][l] + params["conv_b1"][l]
        h1 = jnp.maximum(layer_norm(h1, params["conv_lng"][l], params["conv_lnb"][l]), 0.0)
        return h1 @ params["conv_w2"][l] + params["conv_b2"][l]

    h = x @ params["enc_w"] + params["enc_b"]
    h = gen_conv(h, 0)
    for l in range(1, num_layers):
        z = jnp.maximum(layer_norm(h, params["layer_lng"][l], params["layer_lnb"][l]), 0.0)
        h = h + gen_conv(z, l)
    h = jnp.maximum(layer_norm(h, params["layer_lng"][0], params["layer_lnb"][0]), 0.0)
    g = h @ params["g_w"] + params["g_b"]
    return jnp.max(g, axis=0), h @ params["n_w"] + params["n_b"]


if __name__ == "__main__":
    key = jax.random.PRNGKey(0)
    kx, kp = jax.random.split(key)
    x = jax.random.normal(kx, (N_NODES, IN_CH), jnp.float32)

    # deterministic bidirectional ring graph: E = 2 * N edges
    a = np.arange(N_NODES)
    src = np.concatenate([a, (a + 1) % N_NODES])
    dst = np.concatenate([(a + 1) % N_NODES, a])
    edge_index = jnp.asarray(np.stack([src, dst]), dtype=jnp.int32)

    params = init_params(kp, IN_CH, HID, OUT_CH, NUM_LAYERS)

    # TODO(synk): edge_encoder path and training-mode dropout / grad checkpointing are
    # not exercised (edge_channels=None, inference mode), matching this config's forward.
    g_out, n_out = deeper_gcn_forward(x, edge_index, params)
    jax.block_until_ready((g_out, n_out))

    g_ref, n_ref = ref_forward(x, edge_index, params, NUM_LAYERS)
    assert g_out.shape == (OUT_CH,) and n_out.shape == (N_NODES, OUT_CH + 1)
    # tolerance covers one bf16 rounding of the gather/scatter MXU operands per layer
    assert jnp.allclose(g_out, g_ref, atol=2e-2, rtol=2e-2), "g_out mismatch vs reference"
    assert jnp.allclose(n_out, n_ref, atol=2e-2, rtol=2e-2), "n_out mismatch vs reference"
    print("KERNEL_OK")
</pallas_src>

<mosaic_0001>
module attributes {stable_mosaic.version = 11 : i64} {
  func.func @kernel(%arg0: memref<16x16xf32, #tpu.memory_space<vmem>>, %arg1: memref<32x2xi32, #tpu.memory_space<vmem>>, %arg2: memref<17x32xf32, #tpu.memory_space<vmem>>, %arg3: memref<3x96x64xf32, #tpu.memory_space<vmem>>, %arg4: memref<18x64xf32, #tpu.memory_space<vmem>>, %arg5: memref<33x128xf32, #tpu.memory_space<vmem>>, %arg6: memref<3xf32, #tpu.memory_space<smem>>, %arg7: memref<16x128xf32, #tpu.memory_space<vmem>>, %arg8: memref<1x128xf32, #tpu.memory_space<vmem>>) attributes {dimension_semantics = [], scalar_prefetch = 0 : i64, scratch_operands = 0 : i64, tpu.core_type = #tpu.core_type<tc>} {
    %c0 = arith.constant 0 : index
    %c0_0 = arith.constant 0 : index
    %0 = vector.load %arg1[%c0, %c0_0] : memref<32x2xi32, #tpu.memory_space<vmem>>, vector<32x2xi32>
    %1 = tpu.iota {dimensions = array<i32: 1>} : vector<32x16xi32>
    %2 = vector.extract_strided_slice %0 {offsets = [0, 0], sizes = [32, 1], strides = [1, 1]} : vector<32x2xi32> to vector<32x1xi32>
    %3 = vector.broadcast %2 : vector<32x1xi32> to vector<32x16xi32>
    %4 = arith.cmpi eq, %3, %1 : vector<32x16xi32>
    %5 = arith.extui %4 : vector<32x16xi1> to vector<32x16xi32>
    %6 = arith.sitofp %5 : vector<32x16xi32> to vector<32x16xf32>
    %7 = arith.truncf %6 : vector<32x16xf32> to vector<32x16xbf16>
    %8 = vector.extract_strided_slice %0 {offsets = [0, 1], sizes = [32, 1], strides = [1, 1]} : vector<32x2xi32> to vector<32x1xi32>
    %9 = vector.broadcast %8 : vector<32x1xi32> to vector<32x16xi32>
    %10 = arith.cmpi eq, %9, %1 : vector<32x16xi32>
    %11 = arith.extui %10 : vector<32x16xi1> to vector<32x16xi32>
    %12 = arith.sitofp %11 : vector<32x16xi32> to vector<32x16xf32>
    %13 = arith.truncf %12 : vector<32x16xf32> to vector<32x16xbf16>
    %c0_1 = arith.constant 0 : index
    %c0_2 = arith.constant 0 : index
    %14 = vector.load %arg4[%c0_1, %c0_2] : memref<18x64xf32, #tpu.memory_space<vmem>>, vector<18x64xf32>
    %c0_3 = arith.constant 0 : index
    %c0_4 = arith.constant 0 : index
    %15 = vector.load %arg2[%c0_3, %c0_4] : memref<17x32xf32, #tpu.memory_space<vmem>>, vector<17x32xf32>
    %c0_5 = arith.constant 0 : index
    %c0_6 = arith.constant 0 : index
    %16 = vector.load %arg0[%c0_5, %c0_6] : memref<16x16xf32, #tpu.memory_space<vmem>>, vector<16x16xf32>
    %17 = vector.extract_strided_slice %15 {offsets = [0, 0], sizes = [16, 32], strides = [1, 1]} : vector<17x32xf32> to vector<16x32xf32>
    %cst = arith.constant dense<0.000000e+00> : vector<16x32xf32>
    %18 = tpu.matmul %16, %17, %cst {dimension_numbers = #tpu.dot_dimension_numbers<[1], [0], [0], [1], [0, 0, 1, 1], [], []>} : vector<16x16xf32>, vector<16x32xf32>, vector<16x32xf32> -> vector<16x32xf32>
    %19 = vector.extract_strided_slice %15 {offsets = [16, 0], sizes = [1, 32], strides = [1, 1]} : vector<17x32xf32> to vector<1x32xf32>
    %20 = vector.broadcast %19 : vector<1x32xf32> to vector<16x32xf32>
    %21 = arith.addf %18, %20 : vector<16x32xf32>
    %22 = vector.extract_strided_slice %14 {offsets = [0, 0], sizes = [1, 64], strides = [1, 1]} : vector<18x64xf32> to vector<1x64xf32>
    %23 = vector.extract_strided_slice %14 {offsets = [1, 0], sizes = [1, 64], strides = [1, 1]} : vector<18x64xf32> to vector<1x64xf32>
    %24 = vector.extract_strided_slice %14 {offsets = [2, 0], sizes = [1, 64], strides = [1, 1]} : vector<18x64xf32> to vector<1x64xf32>
    %25 = vector.extract_strided_slice %14 {offsets = [3, 0], sizes = [1, 32], strides = [1, 1]} : vector<18x64xf32> to vector<1x32xf32>
    %c0_7 = arith.constant 0 : index
    %c0_8 = arith.constant 0 : index
    %c0_9 = arith.constant 0 : index
    %26 = vector.load %arg3[%c0_7, %c0_8, %c0_9] : memref<3x96x64xf32, #tpu.memory_space<vmem>>, vector<1x96x64xf32>
    %27 = vector.shape_cast %26 : vector<1x96x64xf32> to vector<96x64xf32>
    %28 = vector.extract_strided_slice %27 {offsets = [0, 0], sizes = [32, 64], strides = [1, 1]} : vector<96x64xf32> to vector<32x64xf32>
    %29 = vector.extract_strided_slice %27 {offsets = [32, 0], sizes = [64, 32], strides = [1, 1]} : vector<96x64xf32> to vector<64x32xf32>
    %30 = arith.truncf %21 : vector<16x32xf32> to vector<16x32xbf16>
    %cst_10 = arith.constant dense<0.000000e+00> : vector<32x32xf32>
    %31 = tpu.matmul %7, %30, %cst_10 {dimension_numbers = #tpu.dot_dimension_numbers<[1], [0], [0], [1], [0, 0, 1, 1], [], []>} : vector<32x16xbf16>, vector<16x32xbf16>, vector<32x32xf32> -> vector<32x32xf32>
    %cst_11 = arith.constant 0.000000e+00 : f32
    %32 = vector.broadcast %cst_11 : f32 to vector<32x32xf32>
    %33 = arith.maximumf %31, %32 : vector<32x32xf32>
    %cst_12 = arith.constant 1.000000e-07 : f32
    %34 = vector.broadcast %cst_12 : f32 to vector<32x32xf32>
    %35 = arith.addf %33, %34 : vector<32x32xf32>
    %c0_13 = arith.constant 0 : index
    %36 = memref.load %arg6[%c0_13] : memref<3xf32, #tpu.memory_space<smem>>
    %37 = vector.broadcast %36 : f32 to vector<32x32xf32>
    %38 = arith.mulf %35, %37 : vector<32x32xf32>
    %cst_14 = arith.constant dense<0xFF800000> : vector<32xf32>
    %39 = vector.multi_reduction <maximumf>, %38, %cst_14 [0] : vector<32x32xf32> to vector<32xf32>
    %40 = vector.shape_cast %39 : vector<32xf32> to vector<1x32xf32>
    %41 = vector.broadcast %40 : vector<1x32xf32> to vector<32x32xf32>
    %42 = arith.subf %38, %41 : vector<32x32xf32>
    %43 = math.exp %42 : vector<32x32xf32>
    %44 = arith.mulf %43, %35 : vector<32x32xf32>
    %45 = tpu.concatenate %43, %44 in 1 : vector<32x32xf32>, vector<32x32xf32> -> vector<32x64xf32>
    %46 = arith.truncf %45 : vector<32x64xf32> to vector<32x64xbf16>
    %cst_15 = arith.constant dense<0.000000e+00> : vector<16x64xf32>
    %47 = tpu.matmul %13, %46, %cst_15 {dimension_numbers = #tpu.dot_dimension_numbers<[0], [0], [1], [1], [0, 1, 1, 1], [], []>} : vector<32x16xbf16>, vector<32x64xbf16>, vector<16x64xf32> -> vector<16x64xf32>
    %48 = vector.extract_strided_slice %47 {offsets = [0, 0], sizes = [16, 32], strides = [1, 1]} : vector<16x64xf32> to vector<16x32xf32>
    %cst_16 = arith.constant 9.99999968E-21 : f32
    %49 = vector.broadcast %cst_16 : f32 to vector<16x32xf32>
    %50 = arith.maximumf %48, %49 : vector<16x32xf32>
    %51 = vector.extract_strided_slice %47 {offsets = [0, 32], sizes = [16, 32], strides = [1, 1]} : vector<16x64xf32> to vector<16x32xf32>
    %52 = arith.divf %51, %50 : vector<16x32xf32>
    %53 = arith.addf %52, %21 : vector<16x32xf32>
    %cst_17 = arith.constant dense<0.000000e+00> : vector<16x64xf32>
    %54 = tpu.matmul %53, %28, %cst_17 {dimension_numbers = #tpu.dot_dimension_numbers<[1], [0], [0], [1], [0, 0, 1, 1], [], []>} : vector<16x32xf32>, vector<32x64xf32>, vector<16x64xf32> -> vector<16x64xf32>
    %55 = vector.broadcast %22 : vector<1x64xf32> to vector<16x64xf32>
    %56 = arith.addf %54, %55 : vector<16x64xf32>
    %cst_18 = arith.constant dense<0.000000e+00> : vector<16xf32>
    %57 = vector.multi_reduction <add>, %56, %cst_18 [1] : vector<16x64xf32> to vector<16xf32>
    %58 = vector.shape_cast %57 : vector<16xf32> to vector<16x1xf32>
    %cst_19 = arith.constant 6.400000e+01 : f32
    %59 = vector.broadcast %cst_19 : f32 to vector<16x1xf32>
    %60 = arith.divf %58, %59 : vector<16x1xf32>
    %61 = arith.mulf %56, %56 : vector<16x64xf32>
    %cst_20 = arith.constant dense<0.000000e+00> : vector<16xf32>
    %62 = vector.multi_reduction <add>, %61, %cst_20 [1] : vector<16x64xf32> to vector<16xf32>
    %63 = vector.shape_cast %62 : vector<16xf32> to vector<16x1xf32>
    %cst_21 = arith.constant 6.400000e+01 : f32
    %64 = vector.broadcast %cst_21 : f32 to vector<16x1xf32>
    %65 = arith.divf %63, %64 : vector<16x1xf32>
    %66 = arith.mulf %60, %60 : vector<16x1xf32>
    %67 = arith.subf %65, %66 : vector<16x1xf32>
    %68 = vector.broadcast %60 : vector<16x1xf32> to vector<16x64xf32>
    %69 = arith.subf %56, %68 : vector<16x64xf32>
    %cst_22 = arith.constant 9.99999974E-6 : f32
    %70 = vector.broadcast %cst_22 : f32 to vector<16x1xf32>
    %71 = arith.addf %67, %70 : vector<16x1xf32>
    %72 = math.rsqrt %71 : vector<16x1xf32>
    %73 = vector.broadcast %72 : vector<16x1xf32> to vector<16x64xf32>
    %74 = arith.mulf %69, %73 : vector<16x64xf32>
    %75 = vector.broadcast %23 : vector<1x64xf32> to vector<16x64xf32>
    %76 = arith.mulf %74, %75 : vector<16x64xf32>
    %77 = vector.broadcast %24 : vector<1x64xf32> to vector<16x64xf32>
    %78 = arith.addf %76, %77 : vector<16x64xf32>
    %cst_23 = arith.constant 0.000000e+00 : f32
    %79 = vector.broadcast %cst_23 : f32 to vector<16x64xf32>
    %80 = arith.maximumf %78, %79 : vector<16x64xf32>
    %cst_24 = arith.constant dense<0.000000e+00> : vector<16x32xf32>
    %81 = tpu.matmul %80, %29, %cst_24 {dimension_numbers = #tpu.dot_dimension_numbers<[1], [0], [0], [1], [0, 0, 1, 1], [], []>} : vector<16x64xf32>, vector<64x32xf32>, vector<16x32xf32> -> vector<16x32xf32>
    %82 = vector.broadcast %25 : vector<1x32xf32> to vector<16x32xf32>
    %83 = arith.addf %81, %82 : vector<16x32xf32>
    %84 = vector.extract_strided_slice %14 {offsets = [10, 0], sizes = [1, 32], strides = [1, 1]} : vector<18x64xf32> to vector<1x32xf32>
    %85 = vector.extract_strided_slice %14 {offsets = [11, 0], sizes = [1, 32], strides = [1, 1]} : vector<18x64xf32> to vector<1x32xf32>
    %cst_25 = arith.constant dense<0.000000e+00> : vector<16xf32>
    %86 = vector.multi_reduction <add>, %83, %cst_25 [1] : vector<16x32xf32> to vector<16xf32>
    %87 = vector.shape_cast %86 : vector<16xf32> to vector<16x1xf32>
    %cst_26 = arith.constant 3.200000e+01 : f32
    %88 = vector.broadcast %cst_26 : f32 to vector<16x1xf32>
    %89 = arith.divf %87, %88 : vector<16x1xf32>
    %90 = arith.mulf %83, %83 : vector<16x32xf32>
    %cst_27 = arith.constant dense<0.000000e+00> : vector<16xf32>
    %91 = vector.multi_reduction <add>, %90, %cst_27 [1] : vector<16x32xf32> to vector<16xf32>
    %92 = vector.shape_cast %91 : vector<16xf32> to vector<16x1xf32>
    %cst_28 = arith.constant 3.200000e+01 : f32
    %93 = vector.broadcast %cst_28 : f32 to vector<16x1xf32>
    %94 = arith.divf %92, %93 : vector<16x1xf32>
    %95 = arith.mulf %89, %89 : vector<16x1xf32>
    %96 = arith.subf %94, %95 : vector<16x1xf32>
    %97 = vector.broadcast %89 : vector<16x1xf32> to vector<16x32xf32>
    %98 = arith.subf %83, %97 : vector<16x32xf32>
    %cst_29 = arith.constant 9.99999974E-6 : f32
    %99 = vector.broadcast %cst_29 : f32 to vector<16x1xf32>
    %100 = arith.addf %96, %99 : vector<16x1xf32>
    %101 = math.rsqrt %100 : vector<16x1xf32>
    %102 = vector.broadcast %101 : vector<16x1xf32> to vector<16x32xf32>
    %103 = arith.mulf %98, %102 : vector<16x32xf32>
    %104 = vector.broadcast %84 : vector<1x32xf32> to vector<16x32xf32>
    %105 = arith.mulf %103, %104 : vector<16x32xf32>
    %106 = vector.broadcast %85 : vector<1x32xf32> to vector<16x32xf32>
    %107 = arith.addf %105, %106 : vector<16x32xf32>
    %cst_30 = arith.constant 0.000000e+00 : f32
    %108 = vector.broadcast %cst_30 : f32 to vector<16x32xf32>
    %109 = arith.maximumf %107, %108 : vector<16x32xf32>
    %110 = vector.extract_strided_slice %14 {offsets = [6, 0], sizes = [1, 64], strides = [1, 1]} : vector<18x64xf32> to vector<1x64xf32>
    %111 = vector.extract_strided_slice %14 {offsets = [7, 0], sizes = [1, 64], strides = [1, 1]} : vector<18x64xf32> to vector<1x64xf32>
    %112 = vector.extract_strided_slice %14 {offsets = [8, 0], sizes = [1, 64], strides = [1, 1]} : vector<18x64xf32> to vector<1x64xf32>
    %113 = vector.extract_strided_slice %14 {offsets = [9, 0], sizes = [1, 32], strides = [1, 1]} : vector<18x64xf32> to vector<1x32xf32>
    %c1 = arith.constant 1 : index
    %c0_31 = arith.constant 0 : index
    %c0_32 = arith.constant 0 : index
    %114 = vector.load %arg3[%c1, %c0_31, %c0_32] : memref<3x96x64xf32, #tpu.memory_space<vmem>>, vector<1x96x64xf32>
    %115 = vector.shape_cast %114 : vector<1x96x64xf32> to vector<96x64xf32>
    %116 = vector.extract_strided_slice %115 {offsets = [0, 0], sizes = [32, 64], strides = [1, 1]} : vector<96x64xf32> to vector<32x64xf32>
    %117 = vector.extract_strided_slice %115 {offsets = [32, 0], sizes = [64, 32], strides = [1, 1]} : vector<96x64xf32> to vector<64x32xf32>
    %118 = arith.truncf %109 : vector<16x32xf32> to vector<16x32xbf16>
    %cst_33 = arith.constant dense<0.000000e+00> : vector<32x32xf32>
    %119 = tpu.matmul %7, %118, %cst_33 {dimension_numbers = #tpu.dot_dimension_numbers<[1], [0], [0], [1], [0, 0, 1, 1], [], []>} : vector<32x16xbf16>, vector<16x32xbf16>, vector<32x32xf32> -> vector<32x32xf32>
    %cst_34 = arith.constant 0.000000e+00 : f32
    %120 = vector.broadcast %cst_34 : f32 to vector<32x32xf32>
    %121 = arith.maximumf %119, %120 : vector<32x32xf32>
    %cst_35 = arith.constant 1.000000e-07 : f32
    %122 = vector.broadcast %cst_35 : f32 to vector<32x32xf32>
    %123 = arith.addf %121, %122 : vector<32x32xf32>
    %c1_36 = arith.constant 1 : index
    %124 = memref.load %arg6[%c1_36] : memref<3xf32, #tpu.memory_space<smem>>
    %125 = vector.broadcast %124 : f32 to vector<32x32xf32>
    %126 = arith.mulf %123, %125 : vector<32x32xf32>
    %cst_37 = arith.constant dense<0xFF800000> : vector<32xf32>
    %127 = vector.multi_reduction <maximumf>, %126, %cst_37 [0] : vector<32x32xf32> to vector<32xf32>
    %128 = vector.shape_cast %127 : vector<32xf32> to vector<1x32xf32>
    %129 = vector.broadcast %128 : vector<1x32xf32> to vector<32x32xf32>
    %130 = arith.subf %126, %129 : vector<32x32xf32>
    %131 = math.exp %130 : vector<32x32xf32>
    %132 = arith.mulf %131, %123 : vector<32x32xf32>
    %133 = tpu.concatenate %131, %132 in 1 : vector<32x32xf32>, vector<32x32xf32> -> vector<32x64xf32>
    %134 = arith.truncf %133 : vector<32x64xf32> to vector<32x64xbf16>
    %cst_38 = arith.constant dense<0.000000e+00> : vector<16x64xf32>
    %135 = tpu.matmul %13, %134, %cst_38 {dimension_numbers = #tpu.dot_dimension_numbers<[0], [0], [1], [1], [0, 1, 1, 1], [], []>} : vector<32x16xbf16>, vector<32x64xbf16>, vector<16x64xf32> -> vector<16x64xf32>
    %136 = vector.extract_strided_slice %135 {offsets = [0, 0], sizes = [16, 32], strides = [1, 1]} : vector<16x64xf32> to vector<16x32xf32>
    %cst_39 = arith.constant 9.99999968E-21 : f32
    %137 = vector.broadcast %cst_39 : f32 to vector<16x32xf32>
    %138 = arith.maximumf %136, %137 : vector<16x32xf32>
    %139 = vector.extract_strided_slice %135 {offsets = [0, 32], sizes = [16, 32], strides = [1, 1]} : vector<16x64xf32> to vector<16x32xf32>
    %140 = arith.divf %139, %138 : vector<16x32xf32>
    %141 = arith.addf %140, %109 : vector<16x32xf32>
    %cst_40 = arith.constant dense<0.000000e+00> : vector<16x64xf32>
    %142 = tpu.matmul %141, %116, %cst_40 {dimension_numbers = #tpu.dot_dimension_numbers<[1], [0], [0], [1], [0, 0, 1, 1], [], []>} : vector<16x32xf32>, vector<32x64xf32>, vector<16x64xf32> -> vector<16x64xf32>
    %143 = vector.broadcast %110 : vector<1x64xf32> to vector<16x64xf32>
    %144 = arith.addf %142, %143 : vector<16x64xf32>
    %cst_41 = arith.constant dense<0.000000e+00> : vector<16xf32>
    %145 = vector.multi_reduction <add>, %144, %cst_41 [1] : vector<16x64xf32> to vector<16xf32>
    %146 = vector.shape_cast %145 : vector<16xf32> to vector<16x1xf32>
    %cst_42 = arith.constant 6.400000e+01 : f32
    %147 = vector.broadcast %cst_42 : f32 to vector<16x1xf32>
    %148 = arith.divf %146, %147 : vector<16x1xf32>
    %149 = arith.mulf %144, %144 : vector<16x64xf32>
    %cst_43 = arith.constant dense<0.000000e+00> : vector<16xf32>
    %150 = vector.multi_reduction <add>, %149, %cst_43 [1] : vector<16x64xf32> to vector<16xf32>
    %151 = vector.shape_cast %150 : vector<16xf32> to vector<16x1xf32>
    %cst_44 = arith.constant 6.400000e+01 : f32
    %152 = vector.broadcast %cst_44 : f32 to vector<16x1xf32>
    %153 = arith.divf %151, %152 : vector<16x1xf32>
    %154 = arith.mulf %148, %148 : vector<16x1xf32>
    %155 = arith.subf %153, %154 : vector<16x1xf32>
    %156 = vector.broadcast %148 : vector<16x1xf32> to vector<16x64xf32>
    %157 = arith.subf %144, %156 : vector<16x64xf32>
    %cst_45 = arith.constant 9.99999974E-6 : f32
    %158 = vector.broadcast %cst_45 : f32 to vector<16x1xf32>
    %159 = arith.addf %155, %158 : vector<16x1xf32>
    %160 = math.rsqrt %159 : vector<16x1xf32>
    %161 = vector.broadcast %160 : vector<16x1xf32> to vector<16x64xf32>
    %162 = arith.mulf %157, %161 : vector<16x64xf32>
    %163 = vector.broadcast %111 : vector<1x64xf32> to vector<16x64xf32>
    %164 = arith.mulf %162, %163 : vector<16x64xf32>
    %165 = vector.broadcast %112 : vector<1x64xf32> to vector<16x64xf32>
    %166 = arith.addf %164, %165 : vector<16x64xf32>
    %cst_46 = arith.constant 0.000000e+00 : f32
    %167 = vector.broadcast %cst_46 : f32 to vector<16x64xf32>
    %168 = arith.maximumf %166, %167 : vector<16x64xf32>
    %cst_47 = arith.constant dense<0.000000e+00> : vector<16x32xf32>
    %169 = tpu.matmul %168, %117, %cst_47 {dimension_numbers = #tpu.dot_dimension_numbers<[1], [0], [0], [1], [0, 0, 1, 1], [], []>} : vector<16x64xf32>, vector<64x32xf32>, vector<16x32xf32> -> vector<16x32xf32>
    %170 = vector.broadcast %113 : vector<1x32xf32> to vector<16x32xf32>
    %171 = arith.addf %169, %170 : vector<16x32xf32>
    %172 = arith.addf %83, %171 : vector<16x32xf32>
    %173 = vector.extract_strided_slice %14 {offsets = [16, 0], sizes = [1, 32], strides = [1, 1]} : vector<18x64xf32> to vector<1x32xf32>
    %174 = vector.extract_strided_slice %14 {offsets = [17, 0], sizes = [1, 32], strides = [1, 1]} : vector<18x64xf32> to vector<1x32xf32>
    %cst_48 = arith.constant dense<0.000000e+00> : vector<16xf32>
    %175 = vector.multi_reduction <add>, %172, %cst_48 [1] : vector<16x32xf32> to vector<16xf32>
    %176 = vector.shape_cast %175 : vector<16xf32> to vector<16x1xf32>
    %cst_49 = arith.constant 3.200000e+01 : f32
    %177 = vector.broadcast %cst_49 : f32 to vector<16x1xf32>
    %178 = arith.divf %176, %177 : vector<16x1xf32>
    %179 = arith.mulf %172, %172 : vector<16x32xf32>
    %cst_50 = arith.constant dense<0.000000e+00> : vector<16xf32>
    %180 = vector.multi_reduction <add>, %179, %cst_50 [1] : vector<16x32xf32> to vector<16xf32>
    %181 = vector.shape_cast %180 : vector<16xf32> to vector<16x1xf32>
    %cst_51 = arith.constant 3.200000e+01 : f32
    %182 = vector.broadcast %cst_51 : f32 to vector<16x1xf32>
    %183 = arith.divf %181, %182 : vector<16x1xf32>
    %184 = arith.mulf %178, %178 : vector<16x1xf32>
    %185 = arith.subf %183, %184 : vector<16x1xf32>
    %186 = vector.broadcast %178 : vector<16x1xf32> to vector<16x32xf32>
    %187 = arith.subf %172, %186 : vector<16x32xf32>
    %cst_52 = arith.constant 9.99999974E-6 : f32
    %188 = vector.broadcast %cst_52 : f32 to vector<16x1xf32>
    %189 = arith.addf %185, %188 : vector<16x1xf32>
    %190 = math.rsqrt %189 : vector<16x1xf32>
    %191 = vector.broadcast %190 : vector<16x1xf32> to vector<16x32xf32>
    %192 = arith.mulf %187, %191 : vector<16x32xf32>
    %193 = vector.broadcast %173 : vector<1x32xf32> to vector<16x32xf32>
    %194 = arith.mulf %192, %193 : vector<16x32xf32>
    %195 = vector.broadcast %174 : vector<1x32xf32> to vector<16x32xf32>
    %196 = arith.addf %194, %195 : vector<16x32xf32>
    %cst_53 = arith.constant 0.000000e+00 : f32
    %197 = vector.broadcast %cst_53 : f32 to vector<16x32xf32>
    %198 = arith.maximumf %196, %197 : vector<16x32xf32>
    %199 = vector.extract_strided_slice %14 {offsets = [12, 0], sizes = [1, 64], strides = [1, 1]} : vector<18x64xf32> to vector<1x64xf32>
    %200 = vector.extract_strided_slice %14 {offsets = [13, 0], sizes = [1, 64], strides = [1, 1]} : vector<18x64xf32> to vector<1x64xf32>
    %201 = vector.extract_strided_slice %14 {offsets = [14, 0], sizes = [1, 64], strides = [1, 1]} : vector<18x64xf32> to vector<1x64xf32>
    %202 = vector.extract_strided_slice %14 {offsets = [15, 0], sizes = [1, 32], strides = [1, 1]} : vector<18x64xf32> to vector<1x32xf32>
    %c2 = arith.constant 2 : index
    %c0_54 = arith.constant 0 : index
    %c0_55 = arith.constant 0 : index
    %203 = vector.load %arg3[%c2, %c0_54, %c0_55] : memref<3x96x64xf32, #tpu.memory_space<vmem>>, vector<1x96x64xf32>
    %204 = vector.shape_cast %203 : vector<1x96x64xf32> to vector<96x64xf32>
    %205 = vector.extract_strided_slice %204 {offsets = [0, 0], sizes = [32, 64], strides = [1, 1]} : vector<96x64xf32> to vector<32x64xf32>
    %206 = vector.extract_strided_slice %204 {offsets = [32, 0], sizes = [64, 32], strides = [1, 1]} : vector<96x64xf32> to vector<64x32xf32>
    %207 = arith.truncf %198 : vector<16x32xf32> to vector<16x32xbf16>
    %cst_56 = arith.constant dense<0.000000e+00> : vector<32x32xf32>
    %208 = tpu.matmul %7, %207, %cst_56 {dimension_numbers = #tpu.dot_dimension_numbers<[1], [0], [0], [1], [0, 0, 1, 1], [], []>} : vector<32x16xbf16>, vector<16x32xbf16>, vector<32x32xf32> -> vector<32x32xf32>
    %cst_57 = arith.constant 0.000000e+00 : f32
    %209 = vector.broadcast %cst_57 : f32 to vector<32x32xf32>
    %210 = arith.maximumf %208, %209 : vector<32x32xf32>
    %cst_58 = arith.constant 1.000000e-07 : f32
    %211 = vector.broadcast %cst_58 : f32 to vector<32x32xf32>
    %212 = arith.addf %210, %211 : vector<32x32xf32>
    %c2_59 = arith.constant 2 : index
    %213 = memref.load %arg6[%c2_59] : memref<3xf32, #tpu.memory_space<smem>>
    %214 = vector.broadcast %213 : f32 to vector<32x32xf32>
    %215 = arith.mulf %212, %214 : vector<32x32xf32>
    %cst_60 = arith.constant dense<0xFF800000> : vector<32xf32>
    %216 = vector.multi_reduction <maximumf>, %215, %cst_60 [0] : vector<32x32xf32> to vector<32xf32>
    %217 = vector.shape_cast %216 : vector<32xf32> to vector<1x32xf32>
    %218 = vector.broadcast %217 : vector<1x32xf32> to vector<32x32xf32>
    %219 = arith.subf %215, %218 : vector<32x32xf32>
    %220 = math.exp %219 : vector<32x32xf32>
    %221 = arith.mulf %220, %212 : vector<32x32xf32>
    %222 = tpu.concatenate %220, %221 in 1 : vector<32x32xf32>, vector<32x32xf32> -> vector<32x64xf32>
    %223 = arith.truncf %222 : vector<32x64xf32> to vector<32x64xbf16>
    %cst_61 = arith.constant dense<0.000000e+00> : vector<16x64xf32>
    %224 = tpu.matmul %13, %223, %cst_61 {dimension_numbers = #tpu.dot_dimension_numbers<[0], [0], [1], [1], [0, 1, 1, 1], [], []>} : vector<32x16xbf16>, vector<32x64xbf16>, vector<16x64xf32> -> vector<16x64xf32>
    %225 = vector.extract_strided_slice %224 {offsets = [0, 0], sizes = [16, 32], strides = [1, 1]} : vector<16x64xf32> to vector<16x32xf32>
    %cst_62 = arith.constant 9.99999968E-21 : f32
    %226 = vector.broadcast %cst_62 : f32 to vector<16x32xf32>
    %227 = arith.maximumf %225, %226 : vector<16x32xf32>
    %228 = vector.extract_strided_slice %224 {offsets = [0, 32], sizes = [16, 32], strides = [1, 1]} : vector<16x64xf32> to vector<16x32xf32>
    %229 = arith.divf %228, %227 : vector<16x32xf32>
    %230 = arith.addf %229, %198 : vector<16x32xf32>
    %cst_63 = arith.constant dense<0.000000e+00> : vector<16x64xf32>
    %231 = tpu.matmul %230, %205, %cst_63 {dimension_numbers = #tpu.dot_dimension_numbers<[1], [0], [0], [1], [0, 0, 1, 1], [], []>} : vector<16x32xf32>, vector<32x64xf32>, vector<16x64xf32> -> vector<16x64xf32>
    %232 = vector.broadcast %199 : vector<1x64xf32> to vector<16x64xf32>
    %233 = arith.addf %231, %232 : vector<16x64xf32>
    %cst_64 = arith.constant dense<0.000000e+00> : vector<16xf32>
    %234 = vector.multi_reduction <add>, %233, %cst_64 [1] : vector<16x64xf32> to vector<16xf32>
    %235 = vector.shape_cast %234 : vector<16xf32> to vector<16x1xf32>
    %cst_65 = arith.constant 6.400000e+01 : f32
    %236 = vector.broadcast %cst_65 : f32 to vector<16x1xf32>
    %237 = arith.divf %235, %236 : vector<16x1xf32>
    %238 = arith.mulf %233, %233 : vector<16x64xf32>
    %cst_66 = arith.constant dense<0.000000e+00> : vector<16xf32>
    %239 = vector.multi_reduction <add>, %238, %cst_66 [1] : vector<16x64xf32> to vector<16xf32>
    %240 = vector.shape_cast %239 : vector<16xf32> to vector<16x1xf32>
    %cst_67 = arith.constant 6.400000e+01 : f32
    %241 = vector.broadcast %cst_67 : f32 to vector<16x1xf32>
    %242 = arith.divf %240, %241 : vector<16x1xf32>
    %243 = arith.mulf %237, %237 : vector<16x1xf32>
    %244 = arith.subf %242, %243 : vector<16x1xf32>
    %245 = vector.broadcast %237 : vector<16x1xf32> to vector<16x64xf32>
    %246 = arith.subf %233, %245 : vector<16x64xf32>
    %cst_68 = arith.constant 9.99999974E-6 : f32
    %247 = vector.broadcast %cst_68 : f32 to vector<16x1xf32>
    %248 = arith.addf %244, %247 : vector<16x1xf32>
    %249 = math.rsqrt %248 : vector<16x1xf32>
    %250 = vector.broadcast %249 : vector<16x1xf32> to vector<16x64xf32>
    %251 = arith.mulf %246, %250 : vector<16x64xf32>
    %252 = vector.broadcast %200 : vector<1x64xf32> to vector<16x64xf32>
    %253 = arith.mulf %251, %252 : vector<16x64xf32>
    %254 = vector.broadcast %201 : vector<1x64xf32> to vector<16x64xf32>
    %255 = arith.addf %253, %254 : vector<16x64xf32>
    %cst_69 = arith.constant 0.000000e+00 : f32
    %256 = vector.broadcast %cst_69 : f32 to vector<16x64xf32>
    %257 = arith.maximumf %255, %256 : vector<16x64xf32>
    %cst_70 = arith.constant dense<0.000000e+00> : vector<16x32xf32>
    %258 = tpu.matmul %257, %206, %cst_70 {dimension_numbers = #tpu.dot_dimension_numbers<[1], [0], [0], [1], [0, 0, 1, 1], [], []>} : vector<16x64xf32>, vector<64x32xf32>, vector<16x32xf32> -> vector<16x32xf32>
    %259 = vector.broadcast %202 : vector<1x32xf32> to vector<16x32xf32>
    %260 = arith.addf %258, %259 : vector<16x32xf32>
    %261 = arith.addf %172, %260 : vector<16x32xf32>
    %262 = vector.extract_strided_slice %14 {offsets = [4, 0], sizes = [1, 32], strides = [1, 1]} : vector<18x64xf32> to vector<1x32xf32>
    %263 = vector.extract_strided_slice %14 {offsets = [5, 0], sizes = [1, 32], strides = [1, 1]} : vector<18x64xf32> to vector<1x32xf32>
    %cst_71 = arith.constant dense<0.000000e+00> : vector<16xf32>
    %264 = vector.multi_reduction <add>, %261, %cst_71 [1] : vector<16x32xf32> to vector<16xf32>
    %265 = vector.shape_cast %264 : vector<16xf32> to vector<16x1xf32>
    %cst_72 = arith.constant 3.200000e+01 : f32
    %266 = vector.broadcast %cst_72 : f32 to vector<16x1xf32>
    %267 = arith.divf %265, %266 : vector<16x1xf32>
    %268 = arith.mulf %261, %261 : vector<16x32xf32>
    %cst_73 = arith.constant dense<0.000000e+00> : vector<16xf32>
    %269 = vector.multi_reduction <add>, %268, %cst_73 [1] : vector<16x32xf32> to vector<16xf32>
    %270 = vector.shape_cast %269 : vector<16xf32> to vector<16x1xf32>
    %cst_74 = arith.constant 3.200000e+01 : f32
    %271 = vector.broadcast %cst_74 : f32 to vector<16x1xf32>
    %272 = arith.divf %270, %271 : vector<16x1xf32>
    %273 = arith.mulf %267, %267 : vector<16x1xf32>
    %274 = arith.subf %272, %273 : vector<16x1xf32>
    %275 = vector.broadcast %267 : vector<16x1xf32> to vector<16x32xf32>
    %276 = arith.subf %261, %275 : vector<16x32xf32>
    %cst_75 = arith.constant 9.99999974E-6 : f32
    %277 = vector.broadcast %cst_75 : f32 to vector<16x1xf32>
    %278 = arith.addf %274, %277 : vector<16x1xf32>
    %279 = math.rsqrt %278 : vector<16x1xf32>
    %280 = vector.broadcast %279 : vector<16x1xf32> to vector<16x32xf32>
    %281 = arith.mulf %276, %280 : vector<16x32xf32>
    %282 = vector.broadcast %262 : vector<1x32xf32> to vector<16x32xf32>
    %283 = arith.mulf %281, %282 : vector<16x32xf32>
    %284 = vector.broadcast %263 : vector<1x32xf32> to vector<16x32xf32>
    %285 = arith.addf %283, %284 : vector<16x32xf32>
    %cst_76 = arith.constant 0.000000e+00 : f32
    %286 = vector.broadcast %cst_76 : f32 to vector<16x32xf32>
    %287 = arith.maximumf %285, %286 : vector<16x32xf32>
    %c0_77 = arith.constant 0 : index
    %c0_78 = arith.constant 0 : index
    %288 = vector.load %arg5[%c0_77, %c0_78] : memref<33x128xf32, #tpu.memory_space<vmem>>, vector<33x128xf32>
    %289 = vector.extract_strided_slice %288 {offsets = [0, 0], sizes = [32, 128], strides = [1, 1]} : vector<33x128xf32> to vector<32x128xf32>
    %cst_79 = arith.constant dense<0.000000e+00> : vector<16x128xf32>
    %290 = tpu.matmul %287, %289, %cst_79 {dimension_numbers = #tpu.dot_dimension_numbers<[1], [0], [0], [1], [0, 0, 1, 1], [], []>} : vector<16x32xf32>, vector<32x128xf32>, vector<16x128xf32> -> vector<16x128xf32>
    %291 = vector.extract_strided_slice %288 {offsets = [32, 0], sizes = [1, 128], strides = [1, 1]} : vector<33x128xf32> to vector<1x128xf32>
    %292 = vector.broadcast %291 : vector<1x128xf32> to vector<16x128xf32>
    %293 = arith.addf %290, %292 : vector<16x128xf32>
    %c0_80 = arith.constant 0 : index
    %c0_81 = arith.constant 0 : index
    %294 = vector.load %arg7[%c0_80, %c0_81] : memref<16x128xf32, #tpu.memory_space<vmem>>, vector<16x128xf32>
    tpu.vector_store %arg7[%c0_80, %c0_81], %293 {strides = array<i32>} : memref<16x128xf32, #tpu.memory_space<vmem>>, vector<16x128xf32>,
    %cst_82 = arith.constant dense<0xFF800000> : vector<128xf32>
    %295 = vector.multi_reduction <maximumf>, %293, %cst_82 [0] : vector<16x128xf32> to vector<128xf32>
    %296 = vector.shape_cast %295 : vector<128xf32> to vector<1x128xf32>
    %c0_83 = arith.constant 0 : index
    %c0_84 = arith.constant 0 : index
    %297 = vector.load %arg8[%c0_83, %c0_84] : memref<1x128xf32, #tpu.memory_space<vmem>>, vector<1x128xf32>
    tpu.vector_store %arg8[%c0_83, %c0_84], %296 {strides = array<i32>} : memref<1x128xf32, #tpu.memory_space<vmem>>, vector<1x128xf32>,
    return
  }
}

</mosaic_0001>

<llo_original>
// kernel: deeper_gcn_forward.1
$region0: #{deeper_gcn_forward.1}
  #allocation0 [shape = 'u32[]', space=smem, size = 0x4, offset = 0x4, fixed_abs, tag = 'smem constant byte address 0x4 - core index']
  #allocation1 [shape = 'u32[72,128]{1,0:T(1,128)}', space=vmem, size = 0x9000, scoped, tag = 'internal scratch']
  %s0 = inlined_call_operand.vmem [shape: f32[16,16], index: 0, kind: input, shape index: {}]
  %s1 = inlined_call_operand.vmem [shape: s32[32,2], index: 1, kind: input, shape index: {}]
  %s2 = inlined_call_operand.vmem [shape: f32[17,32], index: 2, kind: input, shape index: {}]
  %s3 = inlined_call_operand.vmem [shape: f32[3,96,64], index: 3, kind: input, shape index: {}]
  %s4 = inlined_call_operand.vmem [shape: f32[18,64], index: 4, kind: input, shape index: {}]
  %s5 = inlined_call_operand.vmem [shape: f32[33,128], index: 5, kind: input, shape index: {}]
  %s6 = inlined_call_operand.vmem [shape: f32[3], index: 6, kind: input, shape index: {}]
  %s7 = inlined_call_operand.vmem [shape: f32[16,128], index: 7, kind: output, shape index: {0}]
  %s8 = inlined_call_operand.vmem [shape: f32[1,128], index: 8, kind: output, shape index: {1}]
  %9 = xla_tuple %s7, %s8
  %s10 = sld [smem:[#allocation0]]
  $region50: #{deeper_gcn_forward.1} parent=0
    _
  %s12 = ssub.s32 1, %s10
  %s13 = scalar_select 0, %s12, %s10
  $region1: #{deeper_gcn_forward.1} parent=0
    #allocation2 [shape = 'u8[512]{0}', space=smem, size = 0x200, scoped, tag = 'input window, operand 6, single buffered']
    #allocation3 [shape = 's32[1]{0}', space=sflag, size = 0x4, scoped, tag = 'scoped memory for deeper_gcn_forward.1']
    %14 = vsyncpa [#allocation3], 0
    // Predicated region
    $region2: #{deeper_gcn_forward.1} parent=1 // pred_check
      _
    $region3: #{deeper_gcn_forward.1} parent=1 // pred_check_branch
      %16 = sbr.rel (0) target = $region5
    $region4: #{deeper_gcn_forward.1} parent=1 // pred_region
      _
    $region5: #{deeper_gcn_forward.1} parent=1 // pred_fallthru
      _
    // Predicated region
    $region6: #{deeper_gcn_forward.1} parent=1 // pred_check
      _
    $region7: #{deeper_gcn_forward.1} parent=1 // pred_check_branch
      %18 = sbr.rel (0) target = $region9
    $region8: #{deeper_gcn_forward.1} parent=1 // pred_region
      _
    $region9: #{deeper_gcn_forward.1} parent=1 // pred_fallthru
      _
    // Predicated region
    $region10: #{deeper_gcn_forward.1} parent=1 // pred_check
      _
    $region11: #{deeper_gcn_forward.1} parent=1 // pred_check_branch
      %20 = sbr.rel (0) target = $region13
    $region12: #{deeper_gcn_forward.1} parent=1 // pred_region
      _
    $region13: #{deeper_gcn_forward.1} parent=1 // pred_fallthru
      _
    // Predicated region
    $region14: #{deeper_gcn_forward.1} parent=1 // pred_check
      _
    $region15: #{deeper_gcn_forward.1} parent=1 // pred_check_branch
      %22 = sbr.rel (0) target = $region17
    $region16: #{deeper_gcn_forward.1} parent=1 // pred_region
      _
    $region17: #{deeper_gcn_forward.1} parent=1 // pred_fallthru
      _
    // Predicated region
    $region18: #{deeper_gcn_forward.1} parent=1 // pred_check
      _
    $region19: #{deeper_gcn_forward.1} parent=1 // pred_check_branch
      %24 = sbr.rel (0) target = $region21
    $region20: #{deeper_gcn_forward.1} parent=1 // pred_region
      _
    $region21: #{deeper_gcn_forward.1} parent=1 // pred_fallthru
      _
    // Predicated region
    $region22: #{deeper_gcn_forward.1} parent=1 // pred_check
      _
    $region23: #{deeper_gcn_forward.1} parent=1 // pred_check_branch
      %26 = sbr.rel (0) target = $region25
    $region24: #{deeper_gcn_forward.1} parent=1 // pred_region
      _
    $region25: #{deeper_gcn_forward.1} parent=1 // pred_fallthru
      _
    // Predicated region
    $region26: #{deeper_gcn_forward.1} parent=1 // pred_check
      _
    $region27: #{deeper_gcn_forward.1} parent=1 // pred_check_branch
      %28 = sbr.rel (0) target = $region29
    $region28: #{deeper_gcn_forward.1} parent=1 // pred_region
      %30 = vsyncadd [#allocation3], 0
      %s32 = sshll.u32 %s6, 4
      %s33 = int_to_ptr.vmem [resolvable:$true] %s32
      %35 = dma.vmem_to_smem %s33, 16, [#allocation2], [#allocation3]
    $region29: #{deeper_gcn_forward.1} parent=1 // pred_fallthru
      _
    // Predicated region
    $region30: #{deeper_gcn_forward.1} parent=1 // pred_check
      _
    $region31: #{deeper_gcn_forward.1} parent=1 // pred_check_branch
      %37 = sbr.rel (0) target = $region33
    $region32: #{deeper_gcn_forward.1} parent=1 // pred_region
      %39 = dma.done [#allocation3], 16
    $region33: #{deeper_gcn_forward.1} parent=1 // pred_fallthru
      _
    %40 = sfence
    %v42 = vld [vmem:[%s1] sm:$0xff]
    %v43 = vld [vmem:[%s1 + $0x8] sm:$0xff]
    %v44 = vld [vmem:[%s1 + $0x10] sm:$0xff]
    %v45 = vld [vmem:[%s1 + $0x18] sm:$0xff]
    %v46 = vlaneseq
    %v47 = vand.u32 %v46, 127
    %48 = vset.pattern.permute.xlu0 0
    %49 = vperm.xlu0 %48, %v42
    %v50 = vpop.permute.xlu0 %49
    %51 = vset.pattern.permute.xlu0 0
    %52 = vperm.xlu0 %51, %v43
    %v53 = vpop.permute.xlu0 %52
    %54 = vset.pattern.permute.xlu0 0
    %55 = vperm.xlu0 %54, %v44
    %v56 = vpop.permute.xlu0 %55
    %57 = vset.pattern.permute.xlu0 0
    %58 = vperm.xlu0 %57, %v45
    %v59 = vpop.permute.xlu0 %58
    %vm60 = vcmp.eq.s32.totalorder %v50, %v47
    %vm61 = vcmp.eq.s32.totalorder %v53, %v47
    %vm62 = vcmp.eq.s32.totalorder %v56, %v47
    %vm63 = vcmp.eq.s32.totalorder %v59, %v47
    %v64 = vsel %vm60, 1, 0
    %v65 = vsel %vm61, 1, 0
    %v66 = vsel %vm62, 1, 0
    %v67 = vsel %vm63, 1, 0
    %v68 = vcvt.s32.f32 %v64
    %v69 = vcvt.s32.f32 %v65
    %v70 = vcvt.s32.f32 %v66
    %v71 = vcvt.s32.f32 %v67
    %v72 = vpack.c.bf16 %v69, %v68
    %v73 = vpack.c.bf16 %v71, %v70
    %74 = vset.pattern.permute.xlu0 1
    %75 = vperm.xlu0 %74, %v42
    %v76 = vpop.permute.xlu0 %75
    %77 = vset.pattern.permute.xlu0 1
    %78 = vperm.xlu0 %77, %v43
    %v79 = vpop.permute.xlu0 %78
    %80 = vset.pattern.permute.xlu0 1
    %81 = vperm.xlu0 %80, %v44
    %v82 = vpop.permute.xlu0 %81
    %83 = vset.pattern.permute.xlu0 1
    %84 = vperm.xlu0 %83, %v45
    %v85 = vpop.permute.xlu0 %84
    %vm86 = vcmp.eq.s32.totalorder %v76, %v47
    %vm87 = vcmp.eq.s32.totalorder %v79, %v47
    %vm88 = vcmp.eq.s32.totalorder %v82, %v47
    %vm89 = vcmp.eq.s32.totalorder %v85, %v47
    %v90 = vsel %vm86, 1, 0
    %v91 = vsel %vm87, 1, 0
    %v92 = vsel %vm88, 1, 0
    %v93 = vsel %vm89, 1, 0
    %v94 = vcvt.s32.f32 %v90
    %v95 = vcvt.s32.f32 %v91
    %v96 = vcvt.s32.f32 %v92
    %v97 = vcvt.s32.f32 %v93
    %v98 = vpack.c.bf16 %v95, %v94
    %v99 = vpack.c.bf16 %v97, %v96
    %v100 = vld [vmem:[%s4] sm:$0xff]
    %v101 = vld [vmem:[%s4 + $0x8] sm:$0xff]
    %v102 = vld [vmem:[%s4 + $0x10] sm:$0x3]
    %v103 = vld [vmem:[%s2] sm:$0xff]
    %v104 = vld [vmem:[%s2 + $0x8] sm:$0xff]
    %v105 = vld [vmem:[%s2 + $0x10] sm:$0x1]
    %v106 = vld [vmem:[%s0] sm:$0xff]
    %v107 = vld [vmem:[%s0 + $0x8] sm:$0xff]
    %v108 = vperm.slane %v105, 0
    %vm109 = vcmask 130048
    %v111 = vsel %vm109, %v106, 0
    %v114 = vsel %vm109, %v107, 0
    %116 = vmatpush.msra.mxu0 0.0
    %117 = vmatpush.msra.mxu0 0.0
    %118 = vmatpush.msra.mxu0 0.0
    %119 = vmatpush.msra.mxu0 0.0
    %120 = vmatpush.msra.mxu0 0.0
    %121 = vmatpush.msra.mxu0 0.0
    %122 = vmatpush.msra.mxu0 0.0
    %123 = vmatpush.msra.mxu0 0.0
    %124 = vmatpush.msra.mxu0 0.0
    %125 = vmatpush.msra.mxu0 0.0
    %126 = vmatpush.msra.mxu0 0.0
    %127 = vmatpush.msra.mxu0 0.0
    %128 = vmatpush.msra.mxu0 0.0
    %129 = vmatpush.msra.mxu0 0.0
    %130 = vmatpush.msra.mxu0 %v104
    %131 = vmatpush.msra.mxu0 %v103
    %132 = vmatmul.f32.gmra.mxu0 %v111
    %v133 = vpop.f32.mrf.mxu0
    %v134 = vadd.f32 %v108, %v133
    %135 = vmatmul.f32.gmra.mxu0 %v114
    %v136 = vpop.f32.mrf.mxu0
    %v137 = vadd.f32 %v108, %v136
    %138 = vdwg.mxu0
    %v139 = vld [vmem:[%s3] sm:$0xff]
    %v140 = vld [vmem:[%s3 + $0x8] sm:$0xff]
    %v141 = vld [vmem:[%s3 + $0x10] sm:$0xff]
    %v142 = vld [vmem:[%s3 + $0x18] sm:$0xff]
    %v143 = vld [vmem:[%s3 + $0x20] sm:$0xff]
    %v144 = vld [vmem:[%s3 + $0x28] sm:$0xff]
    %v145 = vld [vmem:[%s3 + $0x30] sm:$0xff]
    %v146 = vld [vmem:[%s3 + $0x38] sm:$0xff]
    %v147 = vld [vmem:[%s3 + $0x40] sm:$0xff]
    %v148 = vld [vmem:[%s3 + $0x48] sm:$0xff]
    %v149 = vld [vmem:[%s3 + $0x50] sm:$0xff]
    %v150 = vld [vmem:[%s3 + $0x58] sm:$0xff]
    %v151 = vpack.c.bf16 %v137, %v134
    %v153 = vsel %vm109, %v72, 0
    %v156 = vsel %vm109, %v73, 0
    %158 = vmatpush.bf16.msra.mxu0 0
    %159 = vmatpush.bf16.msra.mxu0 0
    %160 = vmatpush.bf16.msra.mxu0 0
    %161 = vmatpush.bf16.msra.mxu0 0
    %162 = vmatpush.bf16.msra.mxu0 0
    %163 = vmatpush.bf16.msra.mxu0 0
    %164 = vmatpush.bf16.msra.mxu0 0
    %165 = vmatpush.bf16.msra.mxu0 %v151
    %166 = vmatmul.bf16.gmra.mxu0 %v153
    %v167 = vpop.f32.mrf.mxu0
    %v168 = vadd.f32 0.0, %v167
    %v169 = vpop.f32.mrf.mxu0
    %v170 = vadd.f32 0.0, %v169
    %171 = vmatmul.bf16.gmra.mxu0 %v156
    %v172 = vpop.f32.mrf.mxu0
    %v173 = vadd.f32 0.0, %v172
    %v174 = vpop.f32.mrf.mxu0
    %v175 = vadd.f32 0.0, %v174
    %176 = vdwg.mxu0
    %v177 = vmax.f32 %v168, 0.0
    %v178 = vmax.f32 %v170, 0.0
    %v179 = vmax.f32 %v173, 0.0
    %v180 = vmax.f32 %v175, 0.0
    %v181 = vadd.f32 %v177, 1e-07
    %v182 = vadd.f32 %v178, 1e-07
    %v183 = vadd.f32 %v179, 1e-07
    %v184 = vadd.f32 %v180, 1e-07
    %s185 = sld [smem:[#allocation2]]
    %v186 = vstv %s185
    %v187 = vmul.f32 %v181, %v186
    %v188 = vmul.f32 %v182, %v186
    %v189 = vmul.f32 %v183, %v186
    %v190 = vmul.f32 %v184, %v186
    %vm191 = vcmask 261120
    %v192 = vsel %vm191, %v187, -inf
    %v193 = vsel %vm191, %v188, -inf
    %v194 = vsel %vm191, %v189, -inf
    %v195 = vsel %vm191, %v190, -inf
    %v196 = vmax.f32 %v192, %v193
    %v197 = vmax.f32 %v194, %v195
    %v198 = vmax.f32 %v196, %v197
    %v199 = vrot.slane %v198, 4
    %v200 = vmax.f32 %v198, %v199
    %v201 = vrot.slane %v200, 2
    %v202 = vmax.f32 %v200, %v201
    %v203 = vrot.slane %v202, 1
    %v204 = vmax.f32 %v202, %v203
    %v205 = vsub.f32 %v187, %v204
    %v206 = vsub.f32 %v188, %v204
    %v207 = vsub.f32 %v189, %v204
    %v208 = vsub.f32 %v190, %v204
    %v209 = vmul.f32 %v205, 1.442695
    %v210 = vpow.pop %v209
    %v211 = vmul.f32 %v206, 1.442695
    %v212 = vpow.pop %v211
    %v213 = vmul.f32 %v207, 1.442695
    %v214 = vpow.pop %v213
    %v215 = vmul.f32 %v208, 1.442695
    %v216 = vpow.pop %v215
    %v217 = vmul.f32 %v210, %v181
    %v218 = vmul.f32 %v212, %v182
    %v219 = vmul.f32 %v214, %v183
    %v220 = vmul.f32 %v216, %v184
    %225 = vrot.lane.b32.xlu0 %v217, 32
    %v226 = vpop.permute.xlu0 %225
    %227 = vrot.lane.b32.xlu0 %v218, 32
    %v228 = vpop.permute.xlu0 %227
    %229 = vrot.lane.b32.xlu0 %v219, 32
    %v230 = vpop.permute.xlu0 %229
    %231 = vrot.lane.b32.xlu0 %v220, 32
    %v232 = vpop.permute.xlu0 %231
    %v237 = vsel %vm191, %v210, %v226
    %v238 = vsel %vm191, %v212, %v228
    %v239 = vsel %vm191, %v214, %v230
    %v240 = vsel %vm191, %v216, %v232
    %v241 = vpack.c.bf16 %v238, %v237
    %v242 = vpack.c.bf16 %v240, %v239
    %243 = vxpose.xlu0.c.b16.start [1/8] %v98, 128
    %244 = vxpose.xlu0.c.b16.cont [2/8] %v99, 128
    %245 = vxpose.xlu0.c.b16.cont [3/8] 0, 128
    %246 = vxpose.xlu0.c.b16.cont [4/8] 0, 128
    %247 = vxpose.xlu0.c.b16.cont [5/8] 0, 128
    %248 = vxpose.xlu0.c.b16.cont [6/8] 0, 128
    %249 = vxpose.xlu0.c.b16.cont [7/8] 0, 128
    %250 = vxpose.xlu0.c.b16.end [8/8] 0, 128
    %v251 = vpop.trf.xlu0
    %v252 = vpop.trf.xlu0
    %v253 = vpop.trf.xlu0
    %v254 = vpop.trf.xlu0
    %v255 = vpop.trf.xlu0
    %v256 = vpop.trf.xlu0
    %v257 = vpop.trf.xlu0
    %v258 = vpop.trf.xlu0
    %v260 = vsel %vm191, %v251, 0
    %262 = vmatpush.bf16.msra.mxu0 0
    %263 = vmatpush.bf16.msra.mxu0 0
    %264 = vmatpush.bf16.msra.mxu0 0
    %265 = vmatpush.bf16.msra.mxu0 0
    %266 = vmatpush.bf16.msra.mxu0 0
    %267 = vmatpush.bf16.msra.mxu0 0
    %268 = vmatpush.bf16.msra.mxu0 %v242
    %269 = vmatpush.bf16.msra.mxu0 %v241
    %270 = vmatmul.bf16.gmra.mxu0 %v260
    %v271 = vpop.f32.mrf.mxu0
    %v272 = vadd.f32 0.0, %v271
    %v273 = vpop.f32.mrf.mxu0
    %v274 = vadd.f32 0.0, %v273
    %275 = vdwg.mxu0
    %v276 = vmax.f32 %v272, 1e-20
    %v277 = vmax.f32 %v274, 1e-20
    %280 = vrot.lane.b32.xlu0 %v276, 32
    %v281 = vpop.permute.xlu0 %280
    %282 = vrot.lane.b32.xlu0 %v277, 32
    %v283 = vpop.permute.xlu0 %282
    %v286 = vrcp.pop %v281
    %v287 = vmul.f32 %v281, %v286
    %v288 = vsub.f32 1.0, %v287
    %v289 = vmul.f32 %v286, %v288
    %v290 = vadd.f32 %v286, %v289
    %vm291 = vweird.f32 %v281
    %vm292 = vweird.f32 %v286
    %vm293 = vmor %vm291, %vm292
    %v294 = vsel %vm293, %v286, %v290
    %v295 = vand.u32 2147483647, %v281
    %vm296 = vcmp.eq.f32.partialorder %v295, 8.507059e+37
    %v297 = vand.u32 %v281, 2147483648
    %v298 = vor.u32 1.1754944e-38, %v297
    %v299 = vsel %vm296, %v298, %v294
    %v300 = vmul.f32 %v272, %v299
    %v301 = vrcp.pop %v283
    %v302 = vmul.f32 %v283, %v301
    %v303 = vsub.f32 1.0, %v302
    %v304 = vmul.f32 %v301, %v303
    %v305 = vadd.f32 %v301, %v304
    %vm306 = vweird.f32 %v283
    %vm307 = vweird.f32 %v301
    %vm308 = vmor %vm306, %vm307
    %v309 = vsel %vm308, %v301, %v305
    %v310 = vand.u32 2147483647, %v283
    %vm311 = vcmp.eq.f32.partialorder %v310, 8.507059e+37
    %v312 = vand.u32 %v283, 2147483648
    %v313 = vor.u32 1.1754944e-38, %v312
    %v314 = vsel %vm311, %v313, %v309
    %v315 = vmul.f32 %v274, %v314
    %318 = vrot.lane.b32.xlu0 %v134, 32
    %v319 = vpop.permute.xlu0 %318
    %320 = vrot.lane.b32.xlu0 %v137, 32
    %v321 = vpop.permute.xlu0 %320
    %v324 = vadd.f32 %v300, %v319
    %v325 = vadd.f32 %v315, %v321
    %v326 = vperm.slane %v100, 0
    %329 = vrot.lane.b32.xlu0 %v324, 96
    %v330 = vpop.permute.xlu0 %329
    %331 = vrot.lane.b32.xlu0 %v325, 96
    %v332 = vpop.permute.xlu0 %331
    %v333 = vsel %vm191, %v330, 0
    %v335 = vsel %vm191, %v332, 0
    %337 = vmatpush.msra.mxu0 0.0
    %338 = vmatpush.msra.mxu0 0.0
    %339 = vmatpush.msra.mxu0 0.0
    %340 = vmatpush.msra.mxu0 0.0
    %341 = vmatpush.msra.mxu0 0.0
    %342 = vmatpush.msra.mxu0 0.0
    %343 = vmatpush.msra.mxu0 0.0
    %344 = vmatpush.msra.mxu0 0.0
    %345 = vmatpush.msra.mxu0 0.0
    %346 = vmatpush.msra.mxu0 0.0
    %347 = vmatpush.msra.mxu0 0.0
    %348 = vmatpush.msra.mxu0 0.0
    %349 = vmatpush.msra.mxu0 %v142
    %350 = vmatpush.msra.mxu0 %v141
    %351 = vmatpush.msra.mxu0 %v140
    %352 = vmatpush.msra.mxu0 %v139
    %353 = vmatmul.f32.gmra.mxu0 %v333
    %v354 = vpop.f32.mrf.mxu0
    %v355 = vadd.f32 %v326, %v354
    %356 = vmatmul.f32.gmra.mxu0 %v335
    %v357 = vpop.f32.mrf.mxu0
    %v358 = vadd.f32 %v326, %v357
    %359 = vdwg.mxu0
    %vm360 = vcmask 523264
    %v361 = vsel %vm360, %v355, 0.0
    %362 = vadd.xlane.f32.xlu0 %v361
    %v363 = vpop.xlane.xlu0 %362
    %v364 = vsel %vm360, %v358, 0.0
    %365 = vadd.xlane.f32.xlu0 %v364
    %v366 = vpop.xlane.xlu0 %365
    %v367 = vrcp.pop 64.0
    %v368 = vmul.f32 64.0, %v367
    %v369 = vsub.f32 1.0, %v368
    %v370 = vmul.f32 %v367, %v369
    %v371 = vadd.f32 %v367, %v370
    %vm372 = vweird.f32 %v367
    %v373 = vsel %vm372, %v367, %v371
    %v374 = vmul.f32 %v363, %v373
    %v375 = vmul.f32 %v366, %v373
    %v376 = vmul.f32 %v355, %v355
    %v377 = vmul.f32 %v358, %v358
    %v378 = vsel %vm360, %v376, 0.0
    %379 = vadd.xlane.f32.xlu0 %v378
    %v380 = vpop.xlane.xlu0 %379
    %v381 = vsel %vm360, %v377, 0.0
    %382 = vadd.xlane.f32.xlu0 %v381
    %v383 = vpop.xlane.xlu0 %382
    %v384 = vmul.f32 %v380, %v373
    %v385 = vmul.f32 %v383, %v373
    %v386 = vmul.f32 %v374, %v374
    %v387 = vmul.f32 %v375, %v375
    %v388 = vsub.f32 %v384, %v386
    %v389 = vsub.f32 %v385, %v387
    %v390 = vsub.f32 %v355, %v374
    %v391 = vsub.f32 %v358, %v375
    %v392 = vadd.f32 %v388, 1e-05
    %v393 = vadd.f32 %v389, 1e-05
    %v394 = vrsqrt.pop %v392
    %v395 = vmul.f32 %v394, %v392
    %v396 = vmul.f32 %v395, %v394
    %v397 = vmul.f32 0.5, %v396
    %v398 = vsub.f32 1.5, %v397
    %v399 = vmul.f32 %v394, %v398
    %vm400 = vweird.f32 %v392
    %vm401 = vweird.f32 %v394
    %vm402 = vmor %vm400, %vm401
    %v403 = vsel %vm402, %v394, %v399
    %v404 = vrsqrt.pop %v393
    %v405 = vmul.f32 %v404, %v393
    %v406 = vmul.f32 %v405, %v404
    %v407 = vmul.f32 0.5, %v406
    %v408 = vsub.f32 1.5, %v407
    %v409 = vmul.f32 %v404, %v408
    %vm410 = vweird.f32 %v393
    %vm411 = vweird.f32 %v404
    %vm412 = vmor %vm410, %vm411
    %v413 = vsel %vm412, %v404, %v409
    %v414 = vmul.f32 %v390, %v403
    %v415 = vmul.f32 %v391, %v413
    %v416 = vperm.slane %v100, 1
    %v417 = vmul.f32 %v414, %v416
    %v418 = vmul.f32 %v415, %v416
    %v419 = vperm.slane %v100, 2
    %v420 = vadd.f32 %v417, %v419
    %v421 = vadd.f32 %v418, %v419
    %v422 = vmax.f32 %v420, 0.0
    %v423 = vmax.f32 %v421, 0.0
    %v424 = vperm.slane %v100, 3
    %v426 = vsel %vm360, %v422, 0
    %v429 = vsel %vm360, %v423, 0
    %431 = vmatpush.msra.mxu0 0.0
    %432 = vmatpush.msra.mxu0 0.0
    %433 = vmatpush.msra.mxu0 0.0
    %434 = vmatpush.msra.mxu0 0.0
    %435 = vmatpush.msra.mxu0 0.0
    %436 = vmatpush.msra.mxu0 0.0
    %437 = vmatpush.msra.mxu0 0.0
    %438 = vmatpush.msra.mxu0 0.0
    %439 = vmatpush.msra.mxu0 %v150
    %440 = vmatpush.msra.mxu0 %v149
    %441 = vmatpush.msra.mxu0 %v148
    %442 = vmatpush.msra.mxu0 %v147
    %443 = vmatpush.msra.mxu0 %v146
    %444 = vmatpush.msra.mxu0 %v145
    %445 = vmatpush.msra.mxu0 %v144
    %446 = vmatpush.msra.mxu0 %v143
    %447 = vmatmul.f32.gmra.mxu0 %v426
    %v448 = vpop.f32.mrf.mxu0
    %v449 = vadd.f32 %v424, %v448
    %450 = vmatmul.f32.gmra.mxu0 %v429
    %v451 = vpop.f32.mrf.mxu0
    %v452 = vadd.f32 %v424, %v451
    %453 = vdwg.mxu0
    %v454 = vsel %vm191, %v449, 0.0
    %455 = vadd.xlane.f32.xlu0 %v454
    %v456 = vpop.xlane.xlu0 %455
    %v457 = vsel %vm191, %v452, 0.0
    %458 = vadd.xlane.f32.xlu0 %v457
    %v459 = vpop.xlane.xlu0 %458
    %v460 = vrcp.pop 32.0
    %v461 = vmul.f32 32.0, %v460
    %v462 = vsub.f32 1.0, %v461
    %v463 = vmul.f32 %v460, %v462
    %v464 = vadd.f32 %v460, %v463
    %vm465 = vweird.f32 %v460
    %v466 = vsel %vm465, %v460, %v464
    %v467 = vmul.f32 %v456, %v466
    %v468 = vmul.f32 %v459, %v466
    %v469 = vmul.f32 %v449, %v449
    %v470 = vmul.f32 %v452, %v452
    %v471 = vsel %vm191, %v469, 0.0
    %472 = vadd.xlane.f32.xlu0 %v471
    %v473 = vpop.xlane.xlu0 %472
    %v474 = vsel %vm191, %v470, 0.0
    %475 = vadd.xlane.f32.xlu0 %v474
    %v476 = vpop.xlane.xlu0 %475
    %v477 = vmul.f32 %v473, %v466
    %v478 = vmul.f32 %v476, %v466
    %v479 = vmul.f32 %v467, %v467
    %v480 = vmul.f32 %v468, %v468
    %v481 = vsub.f32 %v477, %v479
    %v482 = vsub.f32 %v478, %v480
    %v483 = vsub.f32 %v449, %v467
    %v484 = vsub.f32 %v452, %v468
    %v485 = vadd.f32 %v481, 1e-05
    %v486 = vadd.f32 %v482, 1e-05
    %v487 = vrsqrt.pop %v485
    %v488 = vmul.f32 %v487, %v485
    %v489 = vmul.f32 %v488, %v487
    %v490 = vmul.f32 0.5, %v489
    %v491 = vsub.f32 1.5, %v490
    %v492 = vmul.f32 %v487, %v491
    %vm493 = vweird.f32 %v485
    %vm494 = vweird.f32 %v487
    %vm495 = vmor %vm493, %vm494
    %v496 = vsel %vm495, %v487, %v492
    %v497 = vrsqrt.pop %v486
    %v498 = vmul.f32 %v497, %v486
    %v499 = vmul.f32 %v498, %v497
    %v500 = vmul.f32 0.5, %v499
    %v501 = vsub.f32 1.5, %v500
    %v502 = vmul.f32 %v497, %v501
    %vm503 = vweird.f32 %v486
    %vm504 = vweird.f32 %v497
    %vm505 = vmor %vm503, %vm504
    %v506 = vsel %vm505, %v497, %v502
    %v507 = vmul.f32 %v483, %v496
    %v508 = vmul.f32 %v484, %v506
    %v509 = vperm.slane %v101, 2
    %v510 = vmul.f32 %v507, %v509
    %v511 = vmul.f32 %v508, %v509
    %v512 = vperm.slane %v101, 3
    %v513 = vadd.f32 %v510, %v512
    %v514 = vadd.f32 %v511, %v512
    %v515 = vmax.f32 %v513, 0.0
    %v516 = vmax.f32 %v514, 0.0
    %s517 = scalar_lea.vmem %s3, 96
    %v518 = vld [vmem:[%s517] sm:$0xff]
    %v519 = vld [vmem:[%s517 + $0x8] sm:$0xff]
    %v520 = vld [vmem:[%s517 + $0x10] sm:$0xff]
    %v521 = vld [vmem:[%s517 + $0x18] sm:$0xff]
    %v522 = vld [vmem:[%s517 + $0x20] sm:$0xff]
    %v523 = vld [vmem:[%s517 + $0x28] sm:$0xff]
    %v524 = vld [vmem:[%s517 + $0x30] sm:$0xff]
    %v525 = vld [vmem:[%s517 + $0x38] sm:$0xff]
    %v526 = vld [vmem:[%s517 + $0x40] sm:$0xff]
    %v527 = vld [vmem:[%s517 + $0x48] sm:$0xff]
    %v528 = vld [vmem:[%s517 + $0x50] sm:$0xff]
    %v529 = vld [vmem:[%s517 + $0x58] sm:$0xff]
    %v530 = vpack.c.bf16 %v516, %v515
    %531 = vmatpush.bf16.msra.mxu0 0
    %532 = vmatpush.bf16.msra.mxu0 0
    %533 = vmatpush.bf16.msra.mxu0 0
    %534 = vmatpush.bf16.msra.mxu0 0
    %535 = vmatpush.bf16.msra.mxu0 0
    %536 = vmatpush.bf16.msra.mxu0 0
    %537 = vmatpush.bf16.msra.mxu0 0
    %538 = vmatpush.bf16.msra.mxu0 %v530
    %539 = vmatmul.bf16.gmra.mxu0 %v153
    %v540 = vpop.f32.mrf.mxu0
    %v541 = vadd.f32 0.0, %v540
    %v542 = vpop.f32.mrf.mxu0
    %v543 = vadd.f32 0.0, %v542
    %544 = vmatmul.bf16.gmra.mxu0 %v156
    %v545 = vpop.f32.mrf.mxu0
    %v546 = vadd.f32 0.0, %v545
    %v547 = vpop.f32.mrf.mxu0
    %v548 = vadd.f32 0.0, %v547
    %549 = vdwg.mxu0
    %v550 = vmax.f32 %v541, 0.0
    %v551 = vmax.f32 %v543, 0.0
    %v552 = vmax.f32 %v546, 0.0
    %v553 = vmax.f32 %v548, 0.0
    %v554 = vadd.f32 %v550, 1e-07
    %v555 = vadd.f32 %v551, 1e-07
    %v556 = vadd.f32 %v552, 1e-07
    %v557 = vadd.f32 %v553, 1e-07
    %s558 = sld [smem:[#allocation2 + $0x1]]
    %v559 = vstv %s558
    %v560 = vmul.f32 %v554, %v559
    %v561 = vmul.f32 %v555, %v559
    %v562 = vmul.f32 %v556, %v559
    %v563 = vmul.f32 %v557, %v559
    %v564 = vsel %vm191, %v560, -inf
    %v565 = vsel %vm191, %v561, -inf
    %v566 = vsel %vm191, %v562, -inf
    %v567 = vsel %vm191, %v563, -inf
    %v568 = vmax.f32 %v564, %v565
    %v569 = vmax.f32 %v566, %v567
    %v570 = vmax.f32 %v568, %v569
    %v571 = vrot.slane %v570, 4
    %v572 = vmax.f32 %v570, %v571
    %v573 = vrot.slane %v572, 2
    %v574 = vmax.f32 %v572, %v573
    %v575 = vrot.slane %v574, 1
    %v576 = vmax.f32 %v574, %v575
    %v577 = vsub.f32 %v560, %v576
    %v578 = vsub.f32 %v561, %v576
    %v579 = vsub.f32 %v562, %v576
    %v580 = vsub.f32 %v563, %v576
    %v581 = vmul.f32 %v577, 1.442695
    %v582 = vpow.pop %v581
    %v583 = vmul.f32 %v578, 1.442695
    %v584 = vpow.pop %v583
    %v585 = vmul.f32 %v579, 1.442695
    %v586 = vpow.pop %v585
    %v587 = vmul.f32 %v580, 1.442695
    %v588 = vpow.pop %v587
    %v589 = vmul.f32 %v582, %v554
    %v590 = vmul.f32 %v584, %v555
    %v591 = vmul.f32 %v586, %v556
    %v592 = vmul.f32 %v588, %v557
    %597 = vrot.lane.b32.xlu0 %v589, 32
    %v598 = vpop.permute.xlu0 %597
    %599 = vrot.lane.b32.xlu0 %v590, 32
    %v600 = vpop.permute.xlu0 %599
    %601 = vrot.lane.b32.xlu0 %v591, 32
    %v602 = vpop.permute.xlu0 %601
    %603 = vrot.lane.b32.xlu0 %v592, 32
    %v604 = vpop.permute.xlu0 %603
    %v609 = vsel %vm191, %v582, %v598
    %v610 = vsel %vm191, %v584, %v600
    %v611 = vsel %vm191, %v586, %v602
    %v612 = vsel %vm191, %v588, %v604
    %v613 = vpack.c.bf16 %v610, %v609
    %v614 = vpack.c.bf16 %v612, %v611
    %615 = vmatpush.bf16.msra.mxu0 0
    %616 = vmatpush.bf16.msra.mxu0 0
    %617 = vmatpush.bf16.msra.mxu0 0
    %618 = vmatpush.bf16.msra.mxu0 0
    %619 = vmatpush.bf16.msra.mxu0 0
    %620 = vmatpush.bf16.msra.mxu0 0
    %621 = vmatpush.bf16.msra.mxu0 %v614
    %622 = vmatpush.bf16.msra.mxu0 %v613
    %623 = vmatmul.bf16.gmra.mxu0 %v260
    %v624 = vpop.f32.mrf.mxu0
    %v625 = vadd.f32 0.0, %v624
    %v626 = vpop.f32.mrf.mxu0
    %v627 = vadd.f32 0.0, %v626
    %628 = vdwg.mxu0
    %v629 = vmax.f32 %v625, 1e-20
    %v630 = vmax.f32 %v627, 1e-20
    %633 = vrot.lane.b32.xlu0 %v629, 32
    %v634 = vpop.permute.xlu0 %633
    %635 = vrot.lane.b32.xlu0 %v630, 32
    %v636 = vpop.permute.xlu0 %635
    %v639 = vrcp.pop %v634
    %v640 = vmul.f32 %v634, %v639
    %v641 = vsub.f32 1.0, %v640
    %v642 = vmul.f32 %v639, %v641
    %v643 = vadd.f32 %v639, %v642
    %vm644 = vweird.f32 %v634
    %vm645 = vweird.f32 %v639
    %vm646 = vmor %vm644, %vm645
    %v647 = vsel %vm646, %v639, %v643
    %v648 = vand.u32 2147483647, %v634
    %vm649 = vcmp.eq.f32.partialorder %v648, 8.507059e+37
    %v650 = vand.u32 %v634, 2147483648
    %v651 = vor.u32 1.1754944e-38, %v650
    %v652 = vsel %vm649, %v651, %v647
    %v653 = vmul.f32 %v625, %v652
    %v654 = vrcp.pop %v636
    %v655 = vmul.f32 %v636, %v654
    %v656 = vsub.f32 1.0, %v655
    %v657 = vmul.f32 %v654, %v656
    %v658 = vadd.f32 %v654, %v657
    %vm659 = vweird.f32 %v636
    %vm660 = vweird.f32 %v654
    %vm661 = vmor %vm659, %vm660
    %v662 = vsel %vm661, %v654, %v658
    %v663 = vand.u32 2147483647, %v636
    %vm664 = vcmp.eq.f32.partialorder %v663, 8.507059e+37
    %v665 = vand.u32 %v636, 2147483648
    %v666 = vor.u32 1.1754944e-38, %v665
    %v667 = vsel %vm664, %v666, %v662
    %v668 = vmul.f32 %v627, %v667
    %671 = vrot.lane.b32.xlu0 %v515, 32
    %v672 = vpop.permute.xlu0 %671
    %673 = vrot.lane.b32.xlu0 %v516, 32
    %v674 = vpop.permute.xlu0 %673
    %v677 = vadd.f32 %v653, %v672
    %v678 = vadd.f32 %v668, %v674
    %v679 = vperm.slane %v100, 6
    %682 = vrot.lane.b32.xlu0 %v677, 96
    %v683 = vpop.permute.xlu0 %682
    %684 = vrot.lane.b32.xlu0 %v678, 96
    %v685 = vpop.permute.xlu0 %684
    %v686 = vsel %vm191, %v683, 0
    %v688 = vsel %vm191, %v685, 0
    %690 = vmatpush.msra.mxu0 0.0
    %691 = vmatpush.msra.mxu0 0.0
    %692 = vmatpush.msra.mxu0 0.0
    %693 = vmatpush.msra.mxu0 0.0
    %694 = vmatpush.msra.mxu0 0.0
    %695 = vmatpush.msra.mxu0 0.0
    %696 = vmatpush.msra.mxu0 0.0
    %697 = vmatpush.msra.mxu0 0.0
    %698 = vmatpush.msra.mxu0 0.0
    %699 = vmatpush.msra.mxu0 0.0
    %700 = vmatpush.msra.mxu0 0.0
    %701 = vmatpush.msra.mxu0 0.0
    %702 = vmatpush.msra.mxu0 %v521
    %703 = vmatpush.msra.mxu0 %v520
    %704 = vmatpush.msra.mxu0 %v519
    %705 = vmatpush.msra.mxu0 %v518
    %706 = vmatmul.f32.gmra.mxu0 %v686
    %v707 = vpop.f32.mrf.mxu0
    %v708 = vadd.f32 %v679, %v707
    %709 = vmatmul.f32.gmra.mxu0 %v688
    %v710 = vpop.f32.mrf.mxu0
    %v711 = vadd.f32 %v679, %v710
    %712 = vdwg.mxu0
    %v713 = vsel %vm360, %v708, 0.0
    %714 = vadd.xlane.f32.xlu0 %v713
    %v715 = vpop.xlane.xlu0 %714
    %v716 = vsel %vm360, %v711, 0.0
    %717 = vadd.xlane.f32.xlu0 %v716
    %v718 = vpop.xlane.xlu0 %717
    %v719 = vmul.f32 %v715, %v373
    %v720 = vmul.f32 %v718, %v373
    %v721 = vmul.f32 %v708, %v708
    %v722 = vmul.f32 %v711, %v711
    %v723 = vsel %vm360, %v721, 0.0
    %724 = vadd.xlane.f32.xlu0 %v723
    %v725 = vpop.xlane.xlu0 %724
    %v726 = vsel %vm360, %v722, 0.0
    %727 = vadd.xlane.f32.xlu0 %v726
    %v728 = vpop.xlane.xlu0 %727
    %v729 = vmul.f32 %v725, %v373
    %v730 = vmul.f32 %v728, %v373
    %v731 = vmul.f32 %v719, %v719
    %v732 = vmul.f32 %v720, %v720
    %v733 = vsub.f32 %v729, %v731
    %v734 = vsub.f32 %v730, %v732
    %v735 = vsub.f32 %v708, %v719
    %v736 = vsub.f32 %v711, %v720
    %v737 = vadd.f32 %v733, 1e-05
    %v738 = vadd.f32 %v734, 1e-05
    %v739 = vrsqrt.pop %v737
    %v740 = vmul.f32 %v739, %v737
    %v741 = vmul.f32 %v740, %v739
    %v742 = vmul.f32 0.5, %v741
    %v743 = vsub.f32 1.5, %v742
    %v744 = vmul.f32 %v739, %v743
    %vm745 = vweird.f32 %v737
    %vm746 = vweird.f32 %v739
    %vm747 = vmor %vm745, %vm746
    %v748 = vsel %vm747, %v739, %v744
    %v749 = vrsqrt.pop %v738
    %v750 = vmul.f32 %v749, %v738
    %v751 = vmul.f32 %v750, %v749
    %v752 = vmul.f32 0.5, %v751
    %v753 = vsub.f32 1.5, %v752
    %v754 = vmul.f32 %v749, %v753
    %vm755 = vweird.f32 %v738
    %vm756 = vweird.f32 %v749
    %vm757 = vmor %vm755, %vm756
    %v758 = vsel %vm757, %v749, %v754
    %v759 = vmul.f32 %v735, %v748
    %v760 = vmul.f32 %v736, %v758
    %v761 = vperm.slane %v100, 7
    %v762 = vmul.f32 %v759, %v761
    %v763 = vmul.f32 %v760, %v761
    %v764 = vperm.slane %v101, 0
    %v765 = vadd.f32 %v762, %v764
    %v766 = vadd.f32 %v763, %v764
    %v767 = vmax.f32 %v765, 0.0
    %v768 = vmax.f32 %v766, 0.0
    %v769 = vperm.slane %v101, 1
    %v771 = vsel %vm360, %v767, 0
    %v774 = vsel %vm360, %v768, 0
    %776 = vmatpush.msra.mxu0 0.0
    %777 = vmatpush.msra.mxu0 0.0
    %778 = vmatpush.msra.mxu0 0.0
    %779 = vmatpush.msra.mxu0 0.0
    %780 = vmatpush.msra.mxu0 0.0
    %781 = vmatpush.msra.mxu0 0.0
    %782 = vmatpush.msra.mxu0 0.0
    %783 = vmatpush.msra.mxu0 0.0
    %784 = vmatpush.msra.mxu0 %v529
    %785 = vmatpush.msra.mxu0 %v528
    %786 = vmatpush.msra.mxu0 %v527
    %787 = vmatpush.msra.mxu0 %v526
    %788 = vmatpush.msra.mxu0 %v525
    %789 = vmatpush.msra.mxu0 %v524
    %790 = vmatpush.msra.mxu0 %v523
    %791 = vmatpush.msra.mxu0 %v522
    %792 = vmatmul.f32.gmra.mxu0 %v771
    %v793 = vpop.f32.mrf.mxu0
    %v794 = vadd.f32 %v769, %v793
    %795 = vmatmul.f32.gmra.mxu0 %v774
    %v796 = vpop.f32.mrf.mxu0
    %v797 = vadd.f32 %v769, %v796
    %798 = vdwg.mxu0
    %v799 = vadd.f32 %v449, %v794
    %v800 = vadd.f32 %v452, %v797
    %v801 = vsel %vm191, %v799, 0.0
    %802 = vadd.xlane.f32.xlu0 %v801
    %v803 = vpop.xlane.xlu0 %802
    %v804 = vsel %vm191, %v800, 0.0
    %805 = vadd.xlane.f32.xlu0 %v804
    %v806 = vpop.xlane.xlu0 %805
    %v807 = vmul.f32 %v803, %v466
    %v808 = vmul.f32 %v806, %v466
    %v809 = vmul.f32 %v799, %v799
    %v810 = vmul.f32 %v800, %v800
    %v811 = vsel %vm191, %v809, 0.0
    %812 = vadd.xlane.f32.xlu0 %v811
    %v813 = vpop.xlane.xlu0 %812
    %v814 = vsel %vm191, %v810, 0.0
    %815 = vadd.xlane.f32.xlu0 %v814
    %v816 = vpop.xlane.xlu0 %815
    %v817 = vmul.f32 %v813, %v466
    %v818 = vmul.f32 %v816, %v466
    %v819 = vmul.f32 %v807, %v807
    %v820 = vmul.f32 %v808, %v808
    %v821 = vsub.f32 %v817, %v819
    %v822 = vsub.f32 %v818, %v820
    %v823 = vsub.f32 %v799, %v807
    %v824 = vsub.f32 %v800, %v808
    %v825 = vadd.f32 %v821, 1e-05
    %v826 = vadd.f32 %v822, 1e-05
    %v827 = vrsqrt.pop %v825
    %v828 = vmul.f32 %v827, %v825
    %v829 = vmul.f32 %v828, %v827
    %v830 = vmul.f32 0.5, %v829
    %v831 = vsub.f32 1.5, %v830
    %v832 = vmul.f32 %v827, %v831
    %vm833 = vweird.f32 %v825
    %vm834 = vweird.f32 %v827
    %vm835 = vmor %vm833, %vm834
    %v836 = vsel %vm835, %v827, %v832
    %v837 = vrsqrt.pop %v826
    %v838 = vmul.f32 %v837, %v826
    %v839 = vmul.f32 %v838, %v837
    %v840 = vmul.f32 0.5, %v839
    %v841 = vsub.f32 1.5, %v840
    %v842 = vmul.f32 %v837, %v841
    %vm843 = vweird.f32 %v826
    %vm844 = vweird.f32 %v837
    %vm845 = vmor %vm843, %vm844
    %v846 = vsel %vm845, %v837, %v842
    %v847 = vmul.f32 %v823, %v836
    %v848 = vmul.f32 %v824, %v846
    %v849 = vperm.slane %v102, 0
    %v850 = vmul.f32 %v847, %v849
    %v851 = vmul.f32 %v848, %v849
    %v852 = vperm.slane %v102, 1
    %v853 = vadd.f32 %v850, %v852
    %v854 = vadd.f32 %v851, %v852
    %v855 = vmax.f32 %v853, 0.0
    %v856 = vmax.f32 %v854, 0.0
    %s857 = scalar_lea.vmem %s3, 192
    %v858 = vld [vmem:[%s857] sm:$0xff]
    %v859 = vld [vmem:[%s857 + $0x8] sm:$0xff]
    %v860 = vld [vmem:[%s857 + $0x10] sm:$0xff]
    %v861 = vld [vmem:[%s857 + $0x18] sm:$0xff]
    %v862 = vld [vmem:[%s857 + $0x20] sm:$0xff]
    %v863 = vld [vmem:[%s857 + $0x28] sm:$0xff]
    %v864 = vld [vmem:[%s857 + $0x30] sm:$0xff]
    %v865 = vld [vmem:[%s857 + $0x38] sm:$0xff]
    %v866 = vld [vmem:[%s857 + $0x40] sm:$0xff]
    %v867 = vld [vmem:[%s857 + $0x48] sm:$0xff]
    %v868 = vld [vmem:[%s857 + $0x50] sm:$0xff]
    %v869 = vld [vmem:[%s857 + $0x58] sm:$0xff]
    %v870 = vpack.c.bf16 %v856, %v855
    %871 = vmatpush.bf16.msra.mxu0 0
    %872 = vmatpush.bf16.msra.mxu0 0
    %873 = vmatpush.bf16.msra.mxu0 0
    %874 = vmatpush.bf16.msra.mxu0 0
    %875 = vmatpush.bf16.msra.mxu0 0
    %876 = vmatpush.bf16.msra.mxu0 0
    %877 = vmatpush.bf16.msra.mxu0 0
    %878 = vmatpush.bf16.msra.mxu0 %v870
    %879 = vmatmul.bf16.gmra.mxu0 %v153
    %v880 = vpop.f32.mrf.mxu0
    %v881 = vadd.f32 0.0, %v880
    %v882 = vpop.f32.mrf.mxu0
    %v883 = vadd.f32 0.0, %v882
    %884 = vmatmul.bf16.gmra.mxu0 %v156
    %v885 = vpop.f32.mrf.mxu0
    %v886 = vadd.f32 0.0, %v885
    %v887 = vpop.f32.mrf.mxu0
    %v888 = vadd.f32 0.0, %v887
    %889 = vdwg.mxu0
    %v890 = vmax.f32 %v881, 0.0
    %v891 = vmax.f32 %v883, 0.0
    %v892 = vmax.f32 %v886, 0.0
    %v893 = vmax.f32 %v888, 0.0
    %v894 = vadd.f32 %v890, 1e-07
    %v895 = vadd.f32 %v891, 1e-07
    %v896 = vadd.f32 %v892, 1e-07
    %v897 = vadd.f32 %v893, 1e-07
    %s898 = sld [smem:[#allocation2 + $0x2]]
    %v899 = vstv %s898
    %v900 = vmul.f32 %v894, %v899
    %v901 = vmul.f32 %v895, %v899
    %v902 = vmul.f32 %v896, %v899
    %v903 = vmul.f32 %v897, %v899
    %v904 = vsel %vm191, %v900, -inf
    %v905 = vsel %vm191, %v901, -inf
    %v906 = vsel %vm191, %v902, -inf
    %v907 = vsel %vm191, %v903, -inf
    %v908 = vmax.f32 %v904, %v905
    %v909 = vmax.f32 %v906, %v907
    %v910 = vmax.f32 %v908, %v909
    %v911 = vrot.slane %v910, 4
    %v912 = vmax.f32 %v910, %v911
    %v913 = vrot.slane %v912, 2
    %v914 = vmax.f32 %v912, %v913
    %v915 = vrot.slane %v914, 1
    %v916 = vmax.f32 %v914, %v915
    %v917 = vsub.f32 %v900, %v916
    %v918 = vsub.f32 %v901, %v916
    %v919 = vsub.f32 %v902, %v916
    %v920 = vsub.f32 %v903, %v916
    %v921 = vmul.f32 %v917, 1.442695
    %v922 = vpow.pop %v921
    %v923 = vmul.f32 %v918, 1.442695
    %v924 = vpow.pop %v923
    %v925 = vmul.f32 %v919, 1.442695
    %v926 = vpow.pop %v925
    %v927 = vmul.f32 %v920, 1.442695
    %v928 = vpow.pop %v927
    %v929 = vmul.f32 %v922, %v894
    %v930 = vmul.f32 %v924, %v895
    %v931 = vmul.f32 %v926, %v896
    %v932 = vmul.f32 %v928, %v897
    %937 = vrot.lane.b32.xlu0 %v929, 32
    %v938 = vpop.permute.xlu0 %937
    %939 = vrot.lane.b32.xlu0 %v930, 32
    %v940 = vpop.permute.xlu0 %939
    %941 = vrot.lane.b32.xlu0 %v931, 32
    %v942 = vpop.permute.xlu0 %941
    %943 = vrot.lane.b32.xlu0 %v932, 32
    %v944 = vpop.permute.xlu0 %943
    %v949 = vsel %vm191, %v922, %v938
    %v950 = vsel %vm191, %v924, %v940
    %v951 = vsel %vm191, %v926, %v942
    %v952 = vsel %vm191, %v928, %v944
    %v953 = vpack.c.bf16 %v950, %v949
    %v954 = vpack.c.bf16 %v952, %v951
    %955 = vmatpush.bf16.msra.mxu0 0
    %956 = vmatpush.bf16.msra.mxu0 0
    %957 = vmatpush.bf16.msra.mxu0 0
    %958 = vmatpush.bf16.msra.mxu0 0
    %959 = vmatpush.bf16.msra.mxu0 0
    %960 = vmatpush.bf16.msra.mxu0 0
    %961 = vmatpush.bf16.msra.mxu0 %v954
    %962 = vmatpush.bf16.msra.mxu0 %v953
    %963 = vmatmul.bf16.gmra.mxu0 %v260
    %v964 = vpop.f32.mrf.mxu0
    %v965 = vadd.f32 0.0, %v964
    %v966 = vpop.f32.mrf.mxu0
    %v967 = vadd.f32 0.0, %v966
    %968 = vdwg.mxu0
    %v969 = vmax.f32 %v965, 1e-20
    %v970 = vmax.f32 %v967, 1e-20
    %973 = vrot.lane.b32.xlu0 %v969, 32
    %v974 = vpop.permute.xlu0 %973
    %975 = vrot.lane.b32.xlu0 %v970, 32
    %v976 = vpop.permute.xlu0 %975
    %v979 = vrcp.pop %v974
    %v980 = vmul.f32 %v974, %v979
    %v981 = vsub.f32 1.0, %v980
    %v982 = vmul.f32 %v979, %v981
    %v983 = vadd.f32 %v979, %v982
    %vm984 = vweird.f32 %v974
    %vm985 = vweird.f32 %v979
    %vm986 = vmor %vm984, %vm985
    %v987 = vsel %vm986, %v979, %v983
    %v988 = vand.u32 2147483647, %v974
    %vm989 = vcmp.eq.f32.partialorder %v988, 8.507059e+37
    %v990 = vand.u32 %v974, 2147483648
    %v991 = vor.u32 1.1754944e-38, %v990
    %v992 = vsel %vm989, %v991, %v987
    %v993 = vmul.f32 %v965, %v992
    %v994 = vrcp.pop %v976
    %v995 = vmul.f32 %v976, %v994
    %v996 = vsub.f32 1.0, %v995
    %v997 = vmul.f32 %v994, %v996
    %v998 = vadd.f32 %v994, %v997
    %vm999 = vweird.f32 %v976
    %vm1000 = vweird.f32 %v994
    %vm1001 = vmor %vm999, %vm1000
    %v1002 = vsel %vm1001, %v994, %v998
    %v1003 = vand.u32 2147483647, %v976
    %vm1004 = vcmp.eq.f32.partialorder %v1003, 8.507059e+37
    %v1005 = vand.u32 %v976, 2147483648
    %v1006 = vor.u32 1.1754944e-38, %v1005
    %v1007 = vsel %vm1004, %v1006, %v1002
    %v1008 = vmul.f32 %v967, %v1007
    %1011 = vrot.lane.b32.xlu0 %v855, 32
    %v1012 = vpop.permute.xlu0 %1011
    %1013 = vrot.lane.b32.xlu0 %v856, 32
    %v1014 = vpop.permute.xlu0 %1013
    %v1017 = vadd.f32 %v993, %v1012
    %v1018 = vadd.f32 %v1008, %v1014
    %v1019 = vperm.slane %v101, 4
    %1022 = vrot.lane.b32.xlu0 %v1017, 96
    %v1023 = vpop.permute.xlu0 %1022
    %1024 = vrot.lane.b32.xlu0 %v1018, 96
    %v1025 = vpop.permute.xlu0 %1024
    %v1026 = vsel %vm191, %v1023, 0
    %v1028 = vsel %vm191, %v1025, 0
    %1030 = vmatpush.msra.mxu0 0.0
    %1031 = vmatpush.msra.mxu0 0.0
    %1032 = vmatpush.msra.mxu0 0.0
    %1033 = vmatpush.msra.mxu0 0.0
    %1034 = vmatpush.msra.mxu0 0.0
    %1035 = vmatpush.msra.mxu0 0.0
    %1036 = vmatpush.msra.mxu0 0.0
    %1037 = vmatpush.msra.mxu0 0.0
    %1038 = vmatpush.msra.mxu0 0.0
    %1039 = vmatpush.msra.mxu0 0.0
    %1040 = vmatpush.msra.mxu0 0.0
    %1041 = vmatpush.msra.mxu0 0.0
    %1042 = vmatpush.msra.mxu0 %v861
    %1043 = vmatpush.msra.mxu0 %v860
    %1044 = vmatpush.msra.mxu0 %v859
    %1045 = vmatpush.msra.mxu0 %v858
    %1046 = vmatmul.f32.gmra.mxu0 %v1026
    %v1047 = vpop.f32.mrf.mxu0
    %v1048 = vadd.f32 %v1019, %v1047
    %1049 = vmatmul.f32.gmra.mxu0 %v1028
    %v1050 = vpop.f32.mrf.mxu0
    %v1051 = vadd.f32 %v1019, %v1050
    %1052 = vdwg.mxu0
    %v1053 = vsel %vm360, %v1048, 0.0
    %1054 = vadd.xlane.f32.xlu0 %v1053
    %v1055 = vpop.xlane.xlu0 %1054
    %v1056 = vsel %vm360, %v1051, 0.0
    %1057 = vadd.xlane.f32.xlu0 %v1056
    %v1058 = vpop.xlane.xlu0 %1057
    %v1059 = vmul.f32 %v1055, %v373
    %v1060 = vmul.f32 %v1058, %v373
    %v1061 = vmul.f32 %v1048, %v1048
    %v1062 = vmul.f32 %v1051, %v1051
    %v1063 = vsel %vm360, %v1061, 0.0
    %1064 = vadd.xlane.f32.xlu0 %v1063
    %v1065 = vpop.xlane.xlu0 %1064
    %v1066 = vsel %vm360, %v1062, 0.0
    %1067 = vadd.xlane.f32.xlu0 %v1066
    %v1068 = vpop.xlane.xlu0 %1067
    %v1069 = vmul.f32 %v1065, %v373
    %v1070 = vmul.f32 %v1068, %v373
    %v1071 = vmul.f32 %v1059, %v1059
    %v1072 = vmul.f32 %v1060, %v1060
    %v1073 = vsub.f32 %v1069, %v1071
    %v1074 = vsub.f32 %v1070, %v1072
    %v1075 = vsub.f32 %v1048, %v1059
    %v1076 = vsub.f32 %v1051, %v1060
    %v1077 = vadd.f32 %v1073, 1e-05
    %v1078 = vadd.f32 %v1074, 1e-05
    %v1079 = vrsqrt.pop %v1077
    %v1080 = vmul.f32 %v1079, %v1077
    %v1081 = vmul.f32 %v1080, %v1079
    %v1082 = vmul.f32 0.5, %v1081
    %v1083 = vsub.f32 1.5, %v1082
    %v1084 = vmul.f32 %v1079, %v1083
    %vm1085 = vweird.f32 %v1077
    %vm1086 = vweird.f32 %v1079
    %vm1087 = vmor %vm1085, %vm1086
    %v1088 = vsel %vm1087, %v1079, %v1084
    %v1089 = vrsqrt.pop %v1078
    %v1090 = vmul.f32 %v1089, %v1078
    %v1091 = vmul.f32 %v1090, %v1089
    %v1092 = vmul.f32 0.5, %v1091
    %v1093 = vsub.f32 1.5, %v1092
    %v1094 = vmul.f32 %v1089, %v1093
    %vm1095 = vweird.f32 %v1078
    %vm1096 = vweird.f32 %v1089
    %vm1097 = vmor %vm1095, %vm1096
    %v1098 = vsel %vm1097, %v1089, %v1094
    %v1099 = vmul.f32 %v1075, %v1088
    %v1100 = vmul.f32 %v1076, %v1098
    %v1101 = vperm.slane %v101, 5
    %v1102 = vmul.f32 %v1099, %v1101
    %v1103 = vmul.f32 %v1100, %v1101
    %v1104 = vperm.slane %v101, 6
    %v1105 = vadd.f32 %v1102, %v1104
    %v1106 = vadd.f32 %v1103, %v1104
    %v1107 = vmax.f32 %v1105, 0.0
    %v1108 = vmax.f32 %v1106, 0.0
    %v1109 = vperm.slane %v101, 7
    %v1111 = vsel %vm360, %v1107, 0
    %v1114 = vsel %vm360, %v1108, 0
    %1116 = vmatpush.msra.mxu0 0.0
    %1117 = vmatpush.msra.mxu0 0.0
    %1118 = vmatpush.msra.mxu0 0.0
    %1119 = vmatpush.msra.mxu0 0.0
    %1120 = vmatpush.msra.mxu0 0.0
    %1121 = vmatpush.msra.mxu0 0.0
    %1122 = vmatpush.msra.mxu0 0.0
    %1123 = vmatpush.msra.mxu0 0.0
    %1124 = vmatpush.msra.mxu0 %v869
    %1125 = vmatpush.msra.mxu0 %v868
    %1126 = vmatpush.msra.mxu0 %v867
    %1127 = vmatpush.msra.mxu0 %v866
    %1128 = vmatpush.msra.mxu0 %v865
    %1129 = vmatpush.msra.mxu0 %v864
    %1130 = vmatpush.msra.mxu0 %v863
    %1131 = vmatpush.msra.mxu0 %v862
    %1132 = vmatmul.f32.gmra.mxu0 %v1111
    %v1133 = vpop.f32.mrf.mxu0
    %v1134 = vadd.f32 %v1109, %v1133
    %1135 = vmatmul.f32.gmra.mxu0 %v1114
    %v1136 = vpop.f32.mrf.mxu0
    %v1137 = vadd.f32 %v1109, %v1136
    %1138 = vdwg.mxu0
    %v1139 = vadd.f32 %v799, %v1134
    %v1140 = vadd.f32 %v800, %v1137
    %v1141 = vsel %vm191, %v1139, 0.0
    %1142 = vadd.xlane.f32.xlu0 %v1141
    %v1143 = vpop.xlane.xlu0 %1142
    %v1144 = vsel %vm191, %v1140, 0.0
    %1145 = vadd.xlane.f32.xlu0 %v1144
    %v1146 = vpop.xlane.xlu0 %1145
    %v1147 = vmul.f32 %v1143, %v466
    %v1148 = vmul.f32 %v1146, %v466
    %v1149 = vmul.f32 %v1139, %v1139
    %v1150 = vmul.f32 %v1140, %v1140
    %v1151 = vsel %vm191, %v1149, 0.0
    %1152 = vadd.xlane.f32.xlu0 %v1151
    %v1153 = vpop.xlane.xlu0 %1152
    %v1154 = vsel %vm191, %v1150, 0.0
    %1155 = vadd.xlane.f32.xlu0 %v1154
    %v1156 = vpop.xlane.xlu0 %1155
    %v1157 = vmul.f32 %v1153, %v466
    %v1158 = vmul.f32 %v1156, %v466
    %v1159 = vmul.f32 %v1147, %v1147
    %v1160 = vmul.f32 %v1148, %v1148
    %v1161 = vsub.f32 %v1157, %v1159
    %v1162 = vsub.f32 %v1158, %v1160
    %v1163 = vsub.f32 %v1139, %v1147
    %v1164 = vsub.f32 %v1140, %v1148
    %v1165 = vadd.f32 %v1161, 1e-05
    %v1166 = vadd.f32 %v1162, 1e-05
    %v1167 = vrsqrt.pop %v1165
    %v1168 = vmul.f32 %v1167, %v1165
    %v1169 = vmul.f32 %v1168, %v1167
    %v1170 = vmul.f32 0.5, %v1169
    %v1171 = vsub.f32 1.5, %v1170
    %v1172 = vmul.f32 %v1167, %v1171
    %vm1173 = vweird.f32 %v1165
    %vm1174 = vweird.f32 %v1167
    %vm1175 = vmor %vm1173, %vm1174
    %v1176 = vsel %vm1175, %v1167, %v1172
    %v1177 = vrsqrt.pop %v1166
    %v1178 = vmul.f32 %v1177, %v1166
    %v1179 = vmul.f32 %v1178, %v1177
    %v1180 = vmul.f32 0.5, %v1179
    %v1181 = vsub.f32 1.5, %v1180
    %v1182 = vmul.f32 %v1177, %v1181
    %vm1183 = vweird.f32 %v1166
    %vm1184 = vweird.f32 %v1177
    %vm1185 = vmor %vm1183, %vm1184
    %v1186 = vsel %vm1185, %v1177, %v1182
    %v1187 = vmul.f32 %v1163, %v1176
    %v1188 = vmul.f32 %v1164, %v1186
    %v1189 = vperm.slane %v100, 4
    %v1190 = vmul.f32 %v1187, %v1189
    %v1191 = vmul.f32 %v1188, %v1189
    %v1192 = vperm.slane %v100, 5
    %v1193 = vadd.f32 %v1190, %v1192
    %v1194 = vadd.f32 %v1191, %v1192
    %v1195 = vmax.f32 %v1193, 0.0
    %v1196 = vmax.f32 %v1194, 0.0
    %v1197 = vld [vmem:[%s5] sm:$0xff]
    %v1198 = vld [vmem:[%s5 + $0x8] sm:$0xff]
    %v1199 = vld [vmem:[%s5 + $0x10] sm:$0xff]
    %v1200 = vld [vmem:[%s5 + $0x18] sm:$0xff]
    %v1201 = vld [vmem:[%s5 + $0x20] sm:$0x1]
    %v1202 = vperm.slane %v1201, 0
    %v1204 = vsel %vm191, %v1195, 0
    %v1207 = vsel %vm191, %v1196, 0
    %1209 = vmatpush.msra.mxu0 0.0
    %1210 = vmatpush.msra.mxu0 0.0
    %1211 = vmatpush.msra.mxu0 0.0
    %1212 = vmatpush.msra.mxu0 0.0
    %1213 = vmatpush.msra.mxu0 0.0
    %1214 = vmatpush.msra.mxu0 0.0
    %1215 = vmatpush.msra.mxu0 0.0
    %1216 = vmatpush.msra.mxu0 0.0
    %1217 = vmatpush.msra.mxu0 0.0
    %1218 = vmatpush.msra.mxu0 0.0
    %1219 = vmatpush.msra.mxu0 0.0
    %1220 = vmatpush.msra.mxu0 0.0
    %1221 = vmatpush.msra.mxu0 %v1200
    %1222 = vmatpush.msra.mxu0 %v1199
    %1223 = vmatpush.msra.mxu0 %v1198
    %1224 = vmatpush.msra.mxu0 %v1197
    %1225 = vmatmul.f32.gmra.mxu0 %v1204
    %v1226 = vpop.f32.mrf.mxu0
    %v1227 = vadd.f32 %v1202, %v1226
    %1228 = vmatmul.f32.gmra.mxu0 %v1207
    %v1229 = vpop.f32.mrf.mxu0
    %v1230 = vadd.f32 %v1202, %v1229
    %1231 = vdwg.mxu0
    %1232 = vst [vmem:[%s7] sm:$0xff] %v1227
    %1233 = vst [vmem:[%s7 + $0x8] sm:$0xff] %v1230
    %v1234 = vmax.f32 %v1227, %v1230
    %v1235 = vrot.slane %v1234, 4
    %v1236 = vmax.f32 %v1234, %v1235
    %v1237 = vrot.slane %v1236, 2
    %v1238 = vmax.f32 %v1236, %v1237
    %v1239 = vrot.slane %v1238, 1
    %v1240 = vmax.f32 %v1238, %v1239
    %1241 = vst [vmem:[%s8] sm:$0x1] %v1240
    // Predicated region
    $region34: #{deeper_gcn_forward.1} parent=1 // pred_check
      _
    $region35: #{deeper_gcn_forward.1} parent=1 // pred_check_branch
      %1243 = sbr.rel (0) target = $region37
    $region36: #{deeper_gcn_forward.1} parent=1 // pred_region
      _
    $region37: #{deeper_gcn_forward.1} parent=1 // pred_fallthru
      _
    // Predicated region
    $region38: #{deeper_gcn_forward.1} parent=1 // pred_check
      _
    $region39: #{deeper_gcn_forward.1} parent=1 // pred_check_branch
      %1245 = sbr.rel (0) target = $region41
    $region40: #{deeper_gcn_forward.1} parent=1 // pred_region
      _
    $region41: #{deeper_gcn_forward.1} parent=1 // pred_fallthru
      _
    // Predicated region
    $region42: #{deeper_gcn_forward.1} parent=1 // pred_check
      _
    $region43: #{deeper_gcn_forward.1} parent=1 // pred_check_branch
      %1247 = sbr.rel (0) target = $region45
    $region44: #{deeper_gcn_forward.1} parent=1 // pred_region
      _
    $region45: #{deeper_gcn_forward.1} parent=1 // pred_fallthru
      _
    // Predicated region
    $region46: #{deeper_gcn_forward.1} parent=1 // pred_check
      _
    $region47: #{deeper_gcn_forward.1} parent=1 // pred_check_branch
      %1249 = sbr.rel (0) target = $region49
    $region48: #{deeper_gcn_forward.1} parent=1 // pred_region
      _
    $region49: #{deeper_gcn_forward.1} parent=1 // pred_fallthru
      _
    %1250 = vsyncpa [#allocation3], 1

</llo_original>
